<compile_context>
chip_gen: v7x
topology: tpu7x:2x2x1
jax: 0.10.0
libtpu: 0.0.40
codegen_flags: <defaults>
</compile_context>

<pallas_src>
import functools

import numpy as np
import jax
import jax.numpy as jnp
from jax.experimental import pallas as pl
from jax.experimental.pallas import tpu as pltpu


def _round_up(x, m):
    return ((x + m - 1) // m) * m


# ----------------------------- Pallas kernels ------------------------------

def _head_kernel(a_ref, f_ref, w1a_ref, w1f_ref, scale_ref, bias_ref,
                 w2_ref, b2_ref, o_ref):
    # conv1 (1x1, bias=False) on cat([aspp, feats]) == dot(aspp,w1a)+dot(feat,w1f)
    h = jnp.dot(a_ref[...], w1a_ref[...], preferred_element_type=jnp.float32)
    h = h + jnp.dot(f_ref[...], w1f_ref[...], preferred_element_type=jnp.float32)
    # folded BatchNorm + ReLU
    h = jnp.maximum(h * scale_ref[...] + bias_ref[...], 0.0)
    # conv2 (1x1, bias) -- output padded to 128 lanes for unmasked stores
    o_ref[...] = (jnp.dot(h.astype(w2_ref.dtype), w2_ref[...],
                          preferred_element_type=jnp.float32)
                  + b2_ref[...]).astype(o_ref.dtype)


def head_1x1(aspp_flat, feats_flat, w1a, w1f, bn_scale, bn_bias, w2p, b2p,
             *, block_m=1024):
    P, Ca = aspp_flat.shape
    Cf = feats_flat.shape[1]
    Hd = w1a.shape[1]
    Kp = w2p.shape[1]

    tm = min(block_m, _round_up(P, 8))          # pixel tile (sublane-aligned)
    grid = (pl.cdiv(P, tm),)
    const = lambda i: (0, 0)                    # weights: resident across steps

    return pl.pallas_call(
        _head_kernel,
        out_shape=jax.ShapeDtypeStruct((P, Kp), jnp.float32),
        grid=grid,
        in_specs=[
            pl.BlockSpec((tm, Ca), lambda i: (i, 0)),
            pl.BlockSpec((tm, Cf), lambda i: (i, 0)),
            pl.BlockSpec((Ca, Hd), const),
            pl.BlockSpec((Cf, Hd), const),
            pl.BlockSpec((1, Hd), const),
            pl.BlockSpec((1, Hd), const),
            pl.BlockSpec((Hd, Kp), const),
            pl.BlockSpec((1, Kp), const),
        ],
        out_specs=pl.BlockSpec((tm, Kp), lambda i: (i, 0)),
        compiler_params=pltpu.CompilerParams(
            dimension_semantics=("parallel",),
            vmem_limit_bytes=32 * 1024 * 1024),
    )(aspp_flat, feats_flat, w1a, w1f, bn_scale, bn_bias, w2p, b2p)


def _bilinear_kernel(x_ref, ah_ref, awt_ref, o_ref):
    # x_ref: (Bt, h, w); ah_ref: (H, h); awt_ref: (w, W); o_ref: (Bt, H, W)
    bt = x_ref.shape[0]
    Hn, hn = ah_ref.shape
    wn, Wn = awt_ref.shape
    awt_b = jnp.broadcast_to(awt_ref[...][None, :, :], (bt, wn, Wn))
    ah_b = jnp.broadcast_to(ah_ref[...][None, :, :], (bt, Hn, hn))
    # out = Ah @ x @ Aw^T  as two batched matmuls (batch = slab dim)
    t = jnp.einsum('bhw,bwW->bhW', x_ref[...], awt_b,
                   preferred_element_type=jnp.float32)
    o_ref[...] = jnp.einsum('bHh,bhW->bHW', ah_b, t,
                            preferred_element_type=jnp.float32
                            ).astype(o_ref.dtype)


def bilinear_upsample(x, ah, awt):
    B, h, w = x.shape
    H, W = ah.shape[0], awt.shape[1]

    # pick the biggest slab-block whose VMEM footprint (in/out double-buffered,
    # tmp, broadcast matrices) stays comfortably inside the scoped VMEM budget.
    budget = 8 * 1024 * 1024
    per_slab = 4 * (2 * h * w + 2 * H * W + h * W + H * h + w * W)
    bt = int(max(1, min(B, budget // max(per_slab, 1))))
    grid = (pl.cdiv(B, bt),)

    return pl.pallas_call(
        _bilinear_kernel,
        out_shape=jax.ShapeDtypeStruct((B, H, W), jnp.float32),
        grid=grid,
        in_specs=[pl.BlockSpec((bt, h, w), lambda b: (b, 0, 0)),
                  pl.BlockSpec((H, h), lambda b: (0, 0)),
                  pl.BlockSpec((w, W), lambda b: (0, 0))],
        out_specs=pl.BlockSpec((bt, H, W), lambda b: (b, 0, 0)),
        compiler_params=pltpu.CompilerParams(
            dimension_semantics=("parallel",),
            vmem_limit_bytes=32 * 1024 * 1024),
    )(x, ah, awt)


# ------------------------------- Glue / setup ------------------------------

def _bilinear_matrix(out_size, in_size):
    """PyTorch F.interpolate(mode='bilinear', align_corners=False) as a matrix."""
    d = np.arange(out_size, dtype=np.float64)
    src = (d + 0.5) * (in_size / out_size) - 0.5
    src = np.maximum(src, 0.0)                      # PyTorch clamps negative src
    i0 = np.minimum(np.floor(src).astype(np.int64), in_size - 1)
    i1 = np.minimum(i0 + 1, in_size - 1)
    w1 = np.clip(src - i0, 0.0, 1.0)
    w0 = 1.0 - w1
    A = np.zeros((out_size, in_size), dtype=np.float64)
    rows = d.astype(np.int64)
    np.add.at(A, (rows, i0), w0)
    np.add.at(A, (rows, i1), w1)
    return jnp.asarray(A, dtype=jnp.float32)


def _avgpool_nchw(x, factor):
    n, c, hh, ww = x.shape
    return x.reshape(n, c, hh // factor, factor, ww // factor, factor).mean(axis=(3, 5))


def _backbone(x_nchw, w_backbone, w_lower):
    # surrogate backbone: avgpool + 1x1 conv + ReLU, emits NHWC (channels-last)
    feats = jnp.maximum(
        jnp.einsum('nchw,co->nhwo', _avgpool_nchw(x_nchw, 4), w_backbone), 0.0)
    lower = jnp.maximum(
        jnp.einsum('nchw,co->nhwo', _avgpool_nchw(x_nchw, 2), w_lower), 0.0)
    return feats, lower


def _aspp(feats_nhwc, w_aspp):
    # surrogate aspp: 1x1 conv + ReLU (NHWC)
    return jnp.maximum(jnp.einsum('nhwc,co->nhwo', feats_nhwc, w_aspp), 0.0)


def all_body_forward(x_nchw, params, num_classes):
    N, _, H, W = x_nchw.shape

    feats, lower_features = _backbone(x_nchw, params['w_backbone'], params['w_lower'])
    del lower_features                      # unused downstream; DCE'd under jit
    aspp_out = _aspp(feats, params['w_aspp'])

    _, h, w, C1 = feats.shape
    C2 = aspp_out.shape[-1]
    P = N * h * w

    # channels-last flattening only (no concat, no NCHW transpose of activations)
    aspp_flat = aspp_out.reshape(P, C2).astype(jnp.bfloat16)
    feats_flat = feats.reshape(P, C1).astype(jnp.bfloat16)

    Hd = params['w1_aspp'].shape[1]
    Kpad = _round_up(num_classes, 128)      # lane-dense output, sliced afterwards
    w1a = params['w1_aspp'].astype(jnp.bfloat16)
    w1f = params['w1_feat'].astype(jnp.bfloat16)
    w2p = jnp.pad(params['w2'], ((0, 0), (0, Kpad - num_classes))).astype(jnp.bfloat16)
    b2p = jnp.pad(params['b2'], ((0, 0), (0, Kpad - num_classes)))

    logits_p = head_1x1(aspp_flat, feats_flat, w1a, w1f,
                        params['bn_scale'], params['bn_bias'], w2p, b2p)   # (P, Kpad)

    # slice the real classes, reorder the (small) logits tensor into
    # (N*num_classes, h, w) slabs so the bilinear output lands directly in NCHW.
    logits = logits_p[:, :num_classes].reshape(N, h, w, num_classes)
    slabs = logits.transpose(0, 3, 1, 2).reshape(N * num_classes, h, w)

    up = bilinear_upsample(slabs, params['ah'], params['awt'])
    return up.reshape(N, num_classes, H, W)


def _reference(x_nchw, params, num_classes):
    """Pure-jnp f32 reference of the same math."""
    N, _, H, W = x_nchw.shape
    feats, _ = _backbone(x_nchw, params['w_backbone'], params['w_lower'])
    aspp_out = _aspp(feats, params['w_aspp'])
    xcat = jnp.concatenate([aspp_out, feats], axis=-1)                     # NHWC cat
    w1 = jnp.concatenate([params['w1_aspp'], params['w1_feat']], axis=0)
    hh = jnp.maximum(jnp.einsum('nhwc,ck->nhwk', xcat, w1)
                     * params['bn_scale'] + params['bn_bias'], 0.0)
    lg = jnp.einsum('nhwk,ko->nhwo', hh, params['w2']) + params['b2']      # (N,h,w,K)
    h, w = lg.shape[1], lg.shape[2]
    slabs = lg.transpose(0, 3, 1, 2).reshape(N * num_classes, h, w)
    up = jnp.einsum('Hh,bhw,wW->bHW', params['ah'], slabs, params['awt'])
    return up.reshape(N, num_classes, H, W)


if __name__ == "__main__":
    N, C_IN, H, W = 2, 3, 16, 16
    OUT1, OUT2, HIDDEN, NUM_CLASSES = 8, 8, 1024, 5
    h, w = H // 4, W // 4

    key = jax.random.PRNGKey(0)
    ks = jax.random.split(key, 10)

    eps = 1e-5
    gamma = 1.0 + 0.1 * jax.random.normal(ks[4], (HIDDEN,), jnp.float32)
    beta = 0.1 * jax.random.normal(ks[5], (HIDDEN,), jnp.float32)
    params = dict(
        w_backbone=0.1 * jax.random.normal(ks[0], (C_IN, OUT1), jnp.float32),
        w_lower=0.1 * jax.random.normal(ks[1], (C_IN, 16), jnp.float32),
        w_aspp=0.1 * jax.random.normal(ks[2], (OUT1, OUT2), jnp.float32),
        # conv1 weight split to mirror torch.cat([aspp(features), features], dim=1)
        w1_aspp=0.05 * jax.random.normal(ks[3], (OUT2, HIDDEN), jnp.float32),
        w1_feat=0.05 * jax.random.normal(ks[9], (OUT1, HIDDEN), jnp.float32),
        # inference-mode BN folded: running_mean=0, running_var=1
        bn_scale=(gamma / jnp.sqrt(1.0 + eps)).reshape(1, HIDDEN),
        bn_bias=beta.reshape(1, HIDDEN),
        w2=0.05 * jax.random.normal(ks[6], (HIDDEN, NUM_CLASSES), jnp.float32),
        b2=0.1 * jax.random.normal(ks[7], (1, NUM_CLASSES), jnp.float32),
        ah=_bilinear_matrix(H, h),
        awt=_bilinear_matrix(W, w).T,
    )

    x = jax.random.normal(ks[8], (N, C_IN, H, W), jnp.float32)

    fwd = jax.jit(functools.partial(all_body_forward, num_classes=NUM_CLASSES))
    out = jax.block_until_ready(fwd(x, params))

    ref = jax.block_until_ready(_reference(x, params, NUM_CLASSES))
    assert out.shape == (N, NUM_CLASSES, H, W), out.shape
    max_err = float(jnp.max(jnp.abs(out - ref)))
    assert jnp.allclose(out, ref, atol=2e-2, rtol=2e-2), max_err

    print("KERNEL_OK")
</pallas_src>

<mosaic_0001>
module attributes {stable_mosaic.version = 11 : i64} {
  func.func @_head_kernel(%arg0: i32, %arg1: memref<32x8xbf16, #tpu.memory_space<vmem>>, %arg2: memref<32x8xbf16, #tpu.memory_space<vmem>>, %arg3: memref<8x1024xbf16, #tpu.memory_space<vmem>>, %arg4: memref<8x1024xbf16, #tpu.memory_space<vmem>>, %arg5: memref<1x1024xf32, #tpu.memory_space<vmem>>, %arg6: memref<1x1024xf32, #tpu.memory_space<vmem>>, %arg7: memref<1024x128xbf16, #tpu.memory_space<vmem>>, %arg8: memref<1x128xf32, #tpu.memory_space<vmem>>, %arg9: memref<32x128xf32, #tpu.memory_space<vmem>>) attributes {dimension_semantics = [#tpu.dimension_semantics<parallel>], iteration_bounds = array<i64: 1>, scalar_prefetch = 0 : i64, scratch_operands = 0 : i64, tpu.core_type = #tpu.core_type<tc>, window_params = [{transform_indices = @transform_0, window_bounds = array<i64: 32, 8>}, {transform_indices = @transform_1, window_bounds = array<i64: 32, 8>}, {pipeline_mode = #tpu.pipeline_mode<synchronous>, transform_indices = @transform_2, window_bounds = array<i64: 8, 1024>}, {pipeline_mode = #tpu.pipeline_mode<synchronous>, transform_indices = @transform_3, window_bounds = array<i64: 8, 1024>}, {pipeline_mode = #tpu.pipeline_mode<synchronous>, transform_indices = @transform_4, window_bounds = array<i64: 1, 1024>}, {pipeline_mode = #tpu.pipeline_mode<synchronous>, transform_indices = @transform_5, window_bounds = array<i64: 1, 1024>}, {pipeline_mode = #tpu.pipeline_mode<synchronous>, transform_indices = @transform_6, window_bounds = array<i64: 1024, 128>}, {pipeline_mode = #tpu.pipeline_mode<synchronous>, transform_indices = @transform_7, window_bounds = array<i64: 1, 128>}, {transform_indices = @transform_8, window_bounds = array<i64: 32, 128>}]} {
    %c0 = arith.constant 0 : index
    %c0_0 = arith.constant 0 : index
    %0 = vector.load %arg1[%c0, %c0_0] : memref<32x8xbf16, #tpu.memory_space<vmem>>, vector<32x8xbf16>
    %c0_1 = arith.constant 0 : index
    %c0_2 = arith.constant 0 : index
    %1 = vector.load %arg3[%c0_1, %c0_2] : memref<8x1024xbf16, #tpu.memory_space<vmem>>, vector<8x1024xbf16>
    %cst = arith.constant dense<0.000000e+00> : vector<32x1024xf32>
    %2 = tpu.matmul %0, %1, %cst {dimension_numbers = #tpu.dot_dimension_numbers<[1], [0], [0], [1], [0, 0, 1, 1], [], []>} : vector<32x8xbf16>, vector<8x1024xbf16>, vector<32x1024xf32> -> vector<32x1024xf32>
    %c0_3 = arith.constant 0 : index
    %c0_4 = arith.constant 0 : index
    %3 = vector.load %arg2[%c0_3, %c0_4] : memref<32x8xbf16, #tpu.memory_space<vmem>>, vector<32x8xbf16>
    %c0_5 = arith.constant 0 : index
    %c0_6 = arith.constant 0 : index
    %4 = vector.load %arg4[%c0_5, %c0_6] : memref<8x1024xbf16, #tpu.memory_space<vmem>>, vector<8x1024xbf16>
    %cst_7 = arith.constant dense<0.000000e+00> : vector<32x1024xf32>
    %5 = tpu.matmul %3, %4, %cst_7 {dimension_numbers = #tpu.dot_dimension_numbers<[1], [0], [0], [1], [0, 0, 1, 1], [], []>} : vector<32x8xbf16>, vector<8x1024xbf16>, vector<32x1024xf32> -> vector<32x1024xf32>
    %6 = arith.addf %2, %5 : vector<32x1024xf32>
    %c0_8 = arith.constant 0 : index
    %c0_9 = arith.constant 0 : index
    %7 = vector.load %arg5[%c0_8, %c0_9] : memref<1x1024xf32, #tpu.memory_space<vmem>>, vector<1x1024xf32>
    %8 = vector.broadcast %7 : vector<1x1024xf32> to vector<32x1024xf32>
    %9 = arith.mulf %6, %8 : vector<32x1024xf32>
    %c0_10 = arith.constant 0 : index
    %c0_11 = arith.constant 0 : index
    %10 = vector.load %arg6[%c0_10, %c0_11] : memref<1x1024xf32, #tpu.memory_space<vmem>>, vector<1x1024xf32>
    %11 = vector.broadcast %10 : vector<1x1024xf32> to vector<32x1024xf32>
    %12 = arith.addf %9, %11 : vector<32x1024xf32>
    %cst_12 = arith.constant 0.000000e+00 : f32
    %13 = vector.broadcast %cst_12 : f32 to vector<32x1024xf32>
    %14 = arith.maximumf %12, %13 : vector<32x1024xf32>
    %15 = arith.truncf %14 : vector<32x1024xf32> to vector<32x1024xbf16>
    %c0_13 = arith.constant 0 : index
    %c0_14 = arith.constant 0 : index
    %16 = vector.load %arg7[%c0_13, %c0_14] : memref<1024x128xbf16, #tpu.memory_space<vmem>>, vector<1024x128xbf16>
    %cst_15 = arith.constant dense<0.000000e+00> : vector<32x128xf32>
    %17 = tpu.matmul %15, %16, %cst_15 {dimension_numbers = #tpu.dot_dimension_numbers<[1], [0], [0], [1], [0, 0, 1, 1], [], []>} : vector<32x1024xbf16>, vector<1024x128xbf16>, vector<32x128xf32> -> vector<32x128xf32>
    %c0_16 = arith.constant 0 : index
    %c0_17 = arith.constant 0 : index
    %18 = vector.load %arg8[%c0_16, %c0_17] : memref<1x128xf32, #tpu.memory_space<vmem>>, vector<1x128xf32>
    %19 = vector.broadcast %18 : vector<1x128xf32> to vector<32x128xf32>
    %20 = arith.addf %17, %19 : vector<32x128xf32>
    %c0_18 = arith.constant 0 : index
    %c0_19 = arith.constant 0 : index
    %21 = vector.load %arg9[%c0_18, %c0_19] : memref<32x128xf32, #tpu.memory_space<vmem>>, vector<32x128xf32>
    tpu.vector_store %arg9[%c0_18, %c0_19], %20 {strides = array<i32>} : memref<32x128xf32, #tpu.memory_space<vmem>>, vector<32x128xf32>,
    return
  }
  func.func @transform_0(%arg0: i32) -> (i32, i32) {
    %c0_i32 = arith.constant 0 : i32
    %c0_i32_0 = arith.constant 0 : i32
    return %arg0, %c0_i32 : i32, i32
  }
  func.func @transform_1(%arg0: i32) -> (i32, i32) {
    %c0_i32 = arith.constant 0 : i32
    %c0_i32_0 = arith.constant 0 : i32
    return %arg0, %c0_i32 : i32, i32
  }
  func.func @transform_2(%arg0: i32) -> (i32, i32) {
    %c0_i32 = arith.constant 0 : i32
    %c0_i32_0 = arith.constant 0 : i32
    %c0_i32_1 = arith.constant 0 : i32
    return %c0_i32, %c0_i32_0 : i32, i32
  }
  func.func @transform_3(%arg0: i32) -> (i32, i32) {
    %c0_i32 = arith.constant 0 : i32
    %c0_i32_0 = arith.constant 0 : i32
    %c0_i32_1 = arith.constant 0 : i32
    return %c0_i32, %c0_i32_0 : i32, i32
  }
  func.func @transform_4(%arg0: i32) -> (i32, i32) {
    %c0_i32 = arith.constant 0 : i32
    %c0_i32_0 = arith.constant 0 : i32
    %c0_i32_1 = arith.constant 0 : i32
    return %c0_i32, %c0_i32_0 : i32, i32
  }
  func.func @transform_5(%arg0: i32) -> (i32, i32) {
    %c0_i32 = arith.constant 0 : i32
    %c0_i32_0 = arith.constant 0 : i32
    %c0_i32_1 = arith.constant 0 : i32
    return %c0_i32, %c0_i32_0 : i32, i32
  }
  func.func @transform_6(%arg0: i32) -> (i32, i32) {
    %c0_i32 = arith.constant 0 : i32
    %c0_i32_0 = arith.constant 0 : i32
    %c0_i32_1 = arith.constant 0 : i32
    return %c0_i32, %c0_i32_0 : i32, i32
  }
  func.func @transform_7(%arg0: i32) -> (i32, i32) {
    %c0_i32 = arith.constant 0 : i32
    %c0_i32_0 = arith.constant 0 : i32
    %c0_i32_1 = arith.constant 0 : i32
    return %c0_i32, %c0_i32_0 : i32, i32
  }
  func.func @transform_8(%arg0: i32) -> (i32, i32) {
    %c0_i32 = arith.constant 0 : i32
    %c0_i32_0 = arith.constant 0 : i32
    return %arg0, %c0_i32 : i32, i32
  }
}

module attributes {stable_mosaic.version = 11 : i64} {
  func.func @_bilinear_kernel(%arg0: i32, %arg1: memref<10x4x4xf32, #tpu.memory_space<vmem>>, %arg2: memref<16x4xf32, #tpu.memory_space<vmem>>, %arg3: memref<4x16xf32, #tpu.memory_space<vmem>>, %arg4: memref<10x16x16xf32, #tpu.memory_space<vmem>>) attributes {dimension_semantics = [#tpu.dimension_semantics<parallel>], iteration_bounds = array<i64: 1>, scalar_prefetch = 0 : i64, scratch_operands = 0 : i64, tpu.core_type = #tpu.core_type<tc>, window_params = [{transform_indices = @transform_0, window_bounds = array<i64: 10, 4, 4>}, {pipeline_mode = #tpu.pipeline_mode<synchronous>, transform_indices = @transform_1, window_bounds = array<i64: 16, 4>}, {pipeline_mode = #tpu.pipeline_mode<synchronous>, transform_indices = @transform_2, window_bounds = array<i64: 4, 16>}, {transform_indices = @transform_3, window_bounds = array<i64: 10, 16, 16>}]} {
    %c0 = arith.constant 0 : index
    %c0_0 = arith.constant 0 : index
    %0 = vector.load %arg3[%c0, %c0_0] : memref<4x16xf32, #tpu.memory_space<vmem>>, vector<4x16xf32>
    %1 = vector.shape_cast %0 : vector<4x16xf32> to vector<1x4x16xf32>
    %2 = vector.shape_cast %1 : vector<1x4x16xf32> to vector<1x4x16xf32>
    %3 = vector.broadcast %2 : vector<1x4x16xf32> to vector<10x4x16xf32>
    %c0_1 = arith.constant 0 : index
    %c0_2 = arith.constant 0 : index
    %4 = vector.load %arg2[%c0_1, %c0_2] : memref<16x4xf32, #tpu.memory_space<vmem>>, vector<16x4xf32>
    %5 = vector.shape_cast %4 : vector<16x4xf32> to vector<1x16x4xf32>
    %6 = vector.shape_cast %5 : vector<1x16x4xf32> to vector<1x16x4xf32>
    %7 = vector.broadcast %6 : vector<1x16x4xf32> to vector<10x16x4xf32>
    %c0_3 = arith.constant 0 : index
    %c0_4 = arith.constant 0 : index
    %c0_5 = arith.constant 0 : index
    %8 = vector.load %arg1[%c0_3, %c0_4, %c0_5] : memref<10x4x4xf32, #tpu.memory_space<vmem>>, vector<10x4x4xf32>
    "tpu.trace_start"() <{level = 10 : i32, message = "bhw,bwW->bhW"}> : () -> ()
    %cst = arith.constant dense<0.000000e+00> : vector<10x4x16xf32>
    %9 = tpu.matmul %8, %3, %cst {dimension_numbers = #tpu.dot_dimension_numbers<[2], [1], [1], [2], [0, 0, 0, 1, 1, 2], [0], [0]>} : vector<10x4x4xf32>, vector<10x4x16xf32>, vector<10x4x16xf32> -> vector<10x4x16xf32>
    "tpu.trace_stop"() : () -> ()
    "tpu.trace_start"() <{level = 10 : i32, message = "bHh,bhW->bHW"}> : () -> ()
    %cst_6 = arith.constant dense<0.000000e+00> : vector<10x16x16xf32>
    %10 = tpu.matmul %7, %9, %cst_6 {dimension_numbers = #tpu.dot_dimension_numbers<[2], [1], [1], [2], [0, 0, 0, 1, 1, 2], [0], [0]>} : vector<10x16x4xf32>, vector<10x4x16xf32>, vector<10x16x16xf32> -> vector<10x16x16xf32>
    "tpu.trace_stop"() : () -> ()
    %c0_7 = arith.constant 0 : index
    %c0_8 = arith.constant 0 : index
    %c0_9 = arith.constant 0 : index
    %11 = vector.load %arg4[%c0_7, %c0_8, %c0_9] : memref<10x16x16xf32, #tpu.memory_space<vmem>>, vector<10x16x16xf32>
    tpu.vector_store %arg4[%c0_7, %c0_8, %c0_9], %10 {strides = array<i32>} : memref<10x16x16xf32, #tpu.memory_space<vmem>>, vector<10x16x16xf32>,
    return
  }
  func.func @transform_0(%arg0: i32) -> (i32, i32, i32) {
    %c0_i32 = arith.constant 0 : i32
    %c0_i32_0 = arith.constant 0 : i32
    %c0_i32_1 = arith.constant 0 : i32
    return %arg0, %c0_i32, %c0_i32_0 : i32, i32, i32
  }
  func.func @transform_1(%arg0: i32) -> (i32, i32) {
    %c0_i32 = arith.constant 0 : i32
    %c0_i32_0 = arith.constant 0 : i32
    %c0_i32_1 = arith.constant 0 : i32
    return %c0_i32, %c0_i32_0 : i32, i32
  }
  func.func @transform_2(%arg0: i32) -> (i32, i32) {
    %c0_i32 = arith.constant 0 : i32
    %c0_i32_0 = arith.constant 0 : i32
    %c0_i32_1 = arith.constant 0 : i32
    return %c0_i32, %c0_i32_0 : i32, i32
  }
  func.func @transform_3(%arg0: i32) -> (i32, i32, i32) {
    %c0_i32 = arith.constant 0 : i32
    %c0_i32_0 = arith.constant 0 : i32
    %c0_i32_1 = arith.constant 0 : i32
    return %arg0, %c0_i32, %c0_i32_0 : i32, i32, i32
  }
}

</mosaic_0001>

<llo_original>
// kernel: all_body_forward.2
$region0: #{all_body_forward.2}
  #allocation0 [shape = 'u32[]', space=smem, size = 0x4, offset = 0x4, fixed_abs, tag = 'smem constant byte address 0x4 - core index']
  #allocation1 [shape = 'u32[144,128]{1,0:T(1,128)}', space=vmem, size = 0x12000, scoped, tag = 'internal scratch']
  %s0 = inlined_call_operand.vmem [shape: bf16[32,8], index: 0, kind: input, shape index: {}]
  %s1 = inlined_call_operand.vmem [shape: bf16[32,8], index: 1, kind: input, shape index: {}]
  %s2 = inlined_call_operand.vmem [shape: bf16[8,1024], index: 2, kind: input, shape index: {}]
  %s3 = inlined_call_operand.vmem [shape: bf16[8,1024], index: 3, kind: input, shape index: {}]
  %s4 = inlined_call_operand.vmem [shape: f32[1,1024], index: 4, kind: input, shape index: {}]
  %s5 = inlined_call_operand.vmem [shape: f32[1,1024], index: 5, kind: input, shape index: {}]
  %s6 = inlined_call_operand.vmem [shape: bf16[1024,128], index: 6, kind: input, shape index: {}]
  %s7 = inlined_call_operand.vmem [shape: f32[1,128], index: 7, kind: input, shape index: {}]
  %s8 = inlined_call_operand.vmem [shape: f32[32,128], index: 8, kind: output, shape index: {}]
  %s9 = sld [smem:[#allocation0]]
  $region42: #{all_body_forward.2} parent=0
    _
  %s11 = ssub.s32 1, %s9
  %s12 = scalar_select 0, %s11, %s9
  // Predicated region
  $region2: #{all_body_forward.2} parent=0 // pred_check
    _
  $region3: #{all_body_forward.2} parent=0 // pred_check_branch
    %14 = sbr.rel (0) target = $region5
  $region4: #{all_body_forward.2} parent=0 // pred_region
    _
  $region5: #{all_body_forward.2} parent=0 // pred_fallthru
    _
  // Predicated region
  $region6: #{all_body_forward.2} parent=0 // pred_check
    _
  $region7: #{all_body_forward.2} parent=0 // pred_check_branch
    %16 = sbr.rel (0) target = $region9
  $region8: #{all_body_forward.2} parent=0 // pred_region
    _
  $region9: #{all_body_forward.2} parent=0 // pred_fallthru
    _
  // Predicated region
  $region10: #{all_body_forward.2} parent=0 // pred_check
    _
  $region11: #{all_body_forward.2} parent=0 // pred_check_branch
    %18 = sbr.rel (0) target = $region13
  $region12: #{all_body_forward.2} parent=0 // pred_region
    _
  $region13: #{all_body_forward.2} parent=0 // pred_fallthru
    _
  // Predicated region
  $region14: #{all_body_forward.2} parent=0 // pred_check
    _
  $region15: #{all_body_forward.2} parent=0 // pred_check_branch
    %20 = sbr.rel (0) target = $region17
  $region16: #{all_body_forward.2} parent=0 // pred_region
    _
  $region17: #{all_body_forward.2} parent=0 // pred_fallthru
    _
  // Predicated region
  $region18: #{all_body_forward.2} parent=0 // pred_check
    _
  $region19: #{all_body_forward.2} parent=0 // pred_check_branch
    %22 = sbr.rel (0) target = $region21
  $region20: #{all_body_forward.2} parent=0 // pred_region
    _
  $region21: #{all_body_forward.2} parent=0 // pred_fallthru
    _
  // Predicated region
  $region22: #{all_body_forward.2} parent=0 // pred_check
    _
  $region23: #{all_body_forward.2} parent=0 // pred_check_branch
    %24 = sbr.rel (0) target = $region25
  $region24: #{all_body_forward.2} parent=0 // pred_region
    _
  $region25: #{all_body_forward.2} parent=0 // pred_fallthru
    _
  // Predicated region
  $region26: #{all_body_forward.2} parent=0 // pred_check
    _
  $region27: #{all_body_forward.2} parent=0 // pred_check_branch
    %26 = sbr.rel (0) target = $region29
  $region28: #{all_body_forward.2} parent=0 // pred_region
    _
  $region29: #{all_body_forward.2} parent=0 // pred_fallthru
    _
  // Predicated region
  $region30: #{all_body_forward.2} parent=0 // pred_check
    _
  $region31: #{all_body_forward.2} parent=0 // pred_check_branch
    %28 = sbr.rel (0) target = $region33
  $region32: #{all_body_forward.2} parent=0 // pred_region
    _
  $region33: #{all_body_forward.2} parent=0 // pred_fallthru
    _
  %v30 = vld [vmem:[%s0] sm:$0xf]
  %v31 = vld [vmem:[%s0 + $0x4] sm:$0xf]
  %v32 = vld [vmem:[%s0 + $0x8] sm:$0xf]
  %v33 = vld [vmem:[%s0 + $0xc] sm:$0xf]
  %v34 = vld [vmem:[%s2] sm:$0xff]
  %v35 = vld [vmem:[%s2 + $0x8] sm:$0xff]
  %v36 = vld [vmem:[%s2 + $0x10] sm:$0xff]
  %v37 = vld [vmem:[%s2 + $0x18] sm:$0xff]
  %v38 = vld [vmem:[%s1] sm:$0xf]
  %v39 = vld [vmem:[%s1 + $0x4] sm:$0xf]
  %v40 = vld [vmem:[%s1 + $0x8] sm:$0xf]
  %v41 = vld [vmem:[%s1 + $0xc] sm:$0xf]
  %v42 = vld [vmem:[%s3] sm:$0xff]
  %v43 = vld [vmem:[%s3 + $0x8] sm:$0xff]
  %v44 = vld [vmem:[%s3 + $0x10] sm:$0xff]
  %v45 = vld [vmem:[%s3 + $0x18] sm:$0xff]
  %v50 = vunpack.c.l.b16 %v38
  %v51 = vunpack.c.l.b16 %v39
  %v52 = vunpack.c.l.b16 %v40
  %v53 = vunpack.c.l.b16 %v41
  %v54 = vpack.c.b16 %v51, %v50
  %v55 = vpack.c.b16 %v53, %v52
  %v60 = vunpack.c.l.b16 %v42
  %v61 = vunpack.c.h.b16 %v42
  %v62 = vunpack.c.l.b16 %v43
  %v63 = vunpack.c.h.b16 %v43
  %v64 = vunpack.c.l.b16 %v44
  %v65 = vunpack.c.h.b16 %v44
  %v66 = vunpack.c.l.b16 %v45
  %v67 = vunpack.c.h.b16 %v45
  %v68 = vpack.c.b16 %v60, %v60
  %v69 = vpack.c.b16 %v61, %v61
  %v70 = vpack.c.b16 %v62, %v62
  %v71 = vpack.c.b16 %v63, %v63
  %v72 = vpack.c.b16 %v64, %v64
  %v73 = vpack.c.b16 %v65, %v65
  %v74 = vpack.c.b16 %v66, %v66
  %v75 = vpack.c.b16 %v67, %v67
  %vm76 = vcmask 64512
  %v78 = vsel %vm76, %v54, 0
  %v81 = vsel %vm76, %v55, 0
  %vm83 = vcmask 1043456
  %v85 = vsel %vm83, %v68, 0
  %v88 = vsel %vm83, %v69, 0
  %v91 = vsel %vm83, %v70, 0
  %v94 = vsel %vm83, %v71, 0
  %v97 = vsel %vm83, %v72, 0
  %v100 = vsel %vm83, %v73, 0
  %v103 = vsel %vm83, %v74, 0
  %v106 = vsel %vm83, %v75, 0
  %108 = vmatprep.subr.bf16.mxu0 %v88
  %109 = vmatpush1.bf16.msra.mxu0 %v85
  %110 = vmatprep.subr.bf16.mxu0 0
  %111 = vmatpush1.bf16.msra.mxu0 0
  %112 = vmatprep.subr.bf16.mxu0 0
  %113 = vmatpush1.bf16.msra.mxu0 0
  %114 = vmatprep.subr.bf16.mxu0 0
  %115 = vmatpush1.bf16.msra.mxu0 0
  %116 = vmatprep.subr.bf16.mxu0 0
  %117 = vmatpush1.bf16.msra.mxu0 0
  %118 = vmatprep.subr.bf16.mxu0 0
  %119 = vmatpush1.bf16.msra.mxu0 0
  %120 = vmatprep.subr.bf16.mxu0 0
  %121 = vmatpush1.bf16.msra.mxu0 0
  %122 = vmatprep.subr.bf16.mxu0 0
  %123 = vmatpush1.bf16.msra.mxu0 0
  %124 = vmatprep.subr.bf16.mxu0 0
  %125 = vmatpush1.bf16.msra.mxu0 0
  %126 = vmatprep.subr.bf16.mxu0 0
  %127 = vmatpush1.bf16.msra.mxu0 0
  %128 = vmatprep.subr.bf16.mxu0 0
  %129 = vmatpush1.bf16.msra.mxu0 0
  %130 = vmatprep.subr.bf16.mxu0 0
  %131 = vmatpush1.bf16.msra.mxu0 0
  %132 = vmatprep.subr.bf16.mxu0 0
  %133 = vmatpush1.bf16.msra.mxu0 0
  %134 = vmatprep.subr.bf16.mxu0 0
  %135 = vmatpush1.bf16.msra.mxu0 0
  %136 = vmatprep.subr.bf16.mxu0 0
  %137 = vmatpush1.bf16.msra.mxu0 0
  %138 = vmatprep.subr.bf16.mxu0 0
  %139 = vmatpush1.bf16.msra.mxu0 0
  %140 = vmatprep.mubr.bf16.mxu0 0
  %141 = vmatmul.mubr.bf16.gmra.mrb[0].mxu0 %v78
  %v142 = vpop.f32.mrb[0].mxu0
  %v143 = vadd.f32 0.0, %v142
  %v144 = vpop.f32.mrb[0].mxu0
  %v145 = vadd.f32 0.0, %v144
  %v146 = vpop.f32.mrb[0].mxu0
  %v147 = vadd.f32 0.0, %v146
  %v148 = vpop.f32.mrb[0].mxu0
  %v149 = vadd.f32 0.0, %v148
  %150 = vmatprep.mubr.bf16.mxu0 0
  %151 = vmatmul.mubr.bf16.gmra.mrb[0].mxu0 %v81
  %v152 = vpop.f32.mrb[0].mxu0
  %v153 = vadd.f32 0.0, %v152
  %v154 = vpop.f32.mrb[0].mxu0
  %v155 = vadd.f32 0.0, %v154
  %v156 = vpop.f32.mrb[0].mxu0
  %v157 = vadd.f32 0.0, %v156
  %v158 = vpop.f32.mrb[0].mxu0
  %v159 = vadd.f32 0.0, %v158
  %160 = vdwg.mxu0
  %161 = vmatprep.subr.bf16.mxu0 %v94
  %162 = vmatpush1.bf16.msra.mxu0 %v91
  %163 = vmatprep.subr.bf16.mxu0 0
  %164 = vmatpush1.bf16.msra.mxu0 0
  %165 = vmatprep.subr.bf16.mxu0 0
  %166 = vmatpush1.bf16.msra.mxu0 0
  %167 = vmatprep.subr.bf16.mxu0 0
  %168 = vmatpush1.bf16.msra.mxu0 0
  %169 = vmatprep.subr.bf16.mxu0 0
  %170 = vmatpush1.bf16.msra.mxu0 0
  %171 = vmatprep.subr.bf16.mxu0 0
  %172 = vmatpush1.bf16.msra.mxu0 0
  %173 = vmatprep.subr.bf16.mxu0 0
  %174 = vmatpush1.bf16.msra.mxu0 0
  %175 = vmatprep.subr.bf16.mxu0 0
  %176 = vmatpush1.bf16.msra.mxu0 0
  %177 = vmatprep.subr.bf16.mxu0 0
  %178 = vmatpush1.bf16.msra.mxu0 0
  %179 = vmatprep.subr.bf16.mxu0 0
  %180 = vmatpush1.bf16.msra.mxu0 0
  %181 = vmatprep.subr.bf16.mxu0 0
  %182 = vmatpush1.bf16.msra.mxu0 0
  %183 = vmatprep.subr.bf16.mxu0 0
  %184 = vmatpush1.bf16.msra.mxu0 0
  %185 = vmatprep.subr.bf16.mxu0 0
  %186 = vmatpush1.bf16.msra.mxu0 0
  %187 = vmatprep.subr.bf16.mxu0 0
  %188 = vmatpush1.bf16.msra.mxu0 0
  %189 = vmatprep.subr.bf16.mxu0 0
  %190 = vmatpush1.bf16.msra.mxu0 0
  %191 = vmatprep.subr.bf16.mxu0 0
  %192 = vmatpush1.bf16.msra.mxu0 0
  %193 = vmatprep.mubr.bf16.mxu0 0
  %194 = vmatmul.mubr.bf16.gmra.mrb[0].mxu0 %v78
  %v195 = vpop.f32.mrb[0].mxu0
  %v196 = vadd.f32 0.0, %v195
  %v197 = vpop.f32.mrb[0].mxu0
  %v198 = vadd.f32 0.0, %v197
  %v199 = vpop.f32.mrb[0].mxu0
  %v200 = vadd.f32 0.0, %v199
  %v201 = vpop.f32.mrb[0].mxu0
  %v202 = vadd.f32 0.0, %v201
  %203 = vmatprep.mubr.bf16.mxu0 0
  %204 = vmatmul.mubr.bf16.gmra.mrb[0].mxu0 %v81
  %v205 = vpop.f32.mrb[0].mxu0
  %v206 = vadd.f32 0.0, %v205
  %v207 = vpop.f32.mrb[0].mxu0
  %v208 = vadd.f32 0.0, %v207
  %v209 = vpop.f32.mrb[0].mxu0
  %v210 = vadd.f32 0.0, %v209
  %v211 = vpop.f32.mrb[0].mxu0
  %v212 = vadd.f32 0.0, %v211
  %213 = vdwg.mxu0
  %214 = vmatprep.subr.bf16.mxu0 %v100
  %215 = vmatpush1.bf16.msra.mxu0 %v97
  %216 = vmatprep.subr.bf16.mxu0 0
  %217 = vmatpush1.bf16.msra.mxu0 0
  %218 = vmatprep.subr.bf16.mxu0 0
  %219 = vmatpush1.bf16.msra.mxu0 0
  %220 = vmatprep.subr.bf16.mxu0 0
  %221 = vmatpush1.bf16.msra.mxu0 0
  %222 = vmatprep.subr.bf16.mxu0 0
  %223 = vmatpush1.bf16.msra.mxu0 0
  %224 = vmatprep.subr.bf16.mxu0 0
  %225 = vmatpush1.bf16.msra.mxu0 0
  %226 = vmatprep.subr.bf16.mxu0 0
  %227 = vmatpush1.bf16.msra.mxu0 0
  %228 = vmatprep.subr.bf16.mxu0 0
  %229 = vmatpush1.bf16.msra.mxu0 0
  %230 = vmatprep.subr.bf16.mxu0 0
  %231 = vmatpush1.bf16.msra.mxu0 0
  %232 = vmatprep.subr.bf16.mxu0 0
  %233 = vmatpush1.bf16.msra.mxu0 0
  %234 = vmatprep.subr.bf16.mxu0 0
  %235 = vmatpush1.bf16.msra.mxu0 0
  %236 = vmatprep.subr.bf16.mxu0 0
  %237 = vmatpush1.bf16.msra.mxu0 0
  %238 = vmatprep.subr.bf16.mxu0 0
  %239 = vmatpush1.bf16.msra.mxu0 0
  %240 = vmatprep.subr.bf16.mxu0 0
  %241 = vmatpush1.bf16.msra.mxu0 0
  %242 = vmatprep.subr.bf16.mxu0 0
  %243 = vmatpush1.bf16.msra.mxu0 0
  %244 = vmatprep.subr.bf16.mxu0 0
  %245 = vmatpush1.bf16.msra.mxu0 0
  %246 = vmatprep.mubr.bf16.mxu0 0
  %247 = vmatmul.mubr.bf16.gmra.mrb[0].mxu0 %v78
  %v248 = vpop.f32.mrb[0].mxu0
  %v249 = vadd.f32 0.0, %v248
  %v250 = vpop.f32.mrb[0].mxu0
  %v251 = vadd.f32 0.0, %v250
  %v252 = vpop.f32.mrb[0].mxu0
  %v253 = vadd.f32 0.0, %v252
  %v254 = vpop.f32.mrb[0].mxu0
  %v255 = vadd.f32 0.0, %v254
  %256 = vmatprep.mubr.bf16.mxu0 0
  %257 = vmatmul.mubr.bf16.gmra.mrb[0].mxu0 %v81
  %v258 = vpop.f32.mrb[0].mxu0
  %v259 = vadd.f32 0.0, %v258
  %v260 = vpop.f32.mrb[0].mxu0
  %v261 = vadd.f32 0.0, %v260
  %v262 = vpop.f32.mrb[0].mxu0
  %v263 = vadd.f32 0.0, %v262
  %v264 = vpop.f32.mrb[0].mxu0
  %v265 = vadd.f32 0.0, %v264
  %266 = vdwg.mxu0
  %267 = vmatprep.subr.bf16.mxu0 %v106
  %268 = vmatpush1.bf16.msra.mxu0 %v103
  %269 = vmatprep.subr.bf16.mxu0 0
  %270 = vmatpush1.bf16.msra.mxu0 0
  %271 = vmatprep.subr.bf16.mxu0 0
  %272 = vmatpush1.bf16.msra.mxu0 0
  %273 = vmatprep.subr.bf16.mxu0 0
  %274 = vmatpush1.bf16.msra.mxu0 0
  %275 = vmatprep.subr.bf16.mxu0 0
  %276 = vmatpush1.bf16.msra.mxu0 0
  %277 = vmatprep.subr.bf16.mxu0 0
  %278 = vmatpush1.bf16.msra.mxu0 0
  %279 = vmatprep.subr.bf16.mxu0 0
  %280 = vmatpush1.bf16.msra.mxu0 0
  %281 = vmatprep.subr.bf16.mxu0 0
  %282 = vmatpush1.bf16.msra.mxu0 0
  %283 = vmatprep.subr.bf16.mxu0 0
  %284 = vmatpush1.bf16.msra.mxu0 0
  %285 = vmatprep.subr.bf16.mxu0 0
  %286 = vmatpush1.bf16.msra.mxu0 0
  %287 = vmatprep.subr.bf16.mxu0 0
  %288 = vmatpush1.bf16.msra.mxu0 0
  %289 = vmatprep.subr.bf16.mxu0 0
  %290 = vmatpush1.bf16.msra.mxu0 0
  %291 = vmatprep.subr.bf16.mxu0 0
  %292 = vmatpush1.bf16.msra.mxu0 0
  %293 = vmatprep.subr.bf16.mxu0 0
  %294 = vmatpush1.bf16.msra.mxu0 0
  %295 = vmatprep.subr.bf16.mxu0 0
  %296 = vmatpush1.bf16.msra.mxu0 0
  %297 = vmatprep.subr.bf16.mxu0 0
  %298 = vmatpush1.bf16.msra.mxu0 0
  %299 = vmatprep.mubr.bf16.mxu0 0
  %300 = vmatmul.mubr.bf16.gmra.mrb[0].mxu0 %v78
  %v301 = vpop.f32.mrb[0].mxu0
  %v302 = vadd.f32 0.0, %v301
  %v303 = vpop.f32.mrb[0].mxu0
  %v304 = vadd.f32 0.0, %v303
  %v305 = vpop.f32.mrb[0].mxu0
  %v306 = vadd.f32 0.0, %v305
  %v307 = vpop.f32.mrb[0].mxu0
  %v308 = vadd.f32 0.0, %v307
  %309 = vmatprep.mubr.bf16.mxu0 0
  %310 = vmatmul.mubr.bf16.gmra.mrb[0].mxu0 %v81
  %v311 = vpop.f32.mrb[0].mxu0
  %v312 = vadd.f32 0.0, %v311
  %v313 = vpop.f32.mrb[0].mxu0
  %v314 = vadd.f32 0.0, %v313
  %v315 = vpop.f32.mrb[0].mxu0
  %v316 = vadd.f32 0.0, %v315
  %v317 = vpop.f32.mrb[0].mxu0
  %v318 = vadd.f32 0.0, %v317
  %319 = vdwg.mxu0
  %v324 = vunpack.c.l.b16 %v30
  %v325 = vunpack.c.l.b16 %v31
  %v326 = vunpack.c.l.b16 %v32
  %v327 = vunpack.c.l.b16 %v33
  %v328 = vpack.c.b16 %v325, %v324
  %v329 = vpack.c.b16 %v327, %v326
  %v334 = vunpack.c.l.b16 %v34
  %v335 = vunpack.c.h.b16 %v34
  %v336 = vunpack.c.l.b16 %v35
  %v337 = vunpack.c.h.b16 %v35
  %v338 = vunpack.c.l.b16 %v36
  %v339 = vunpack.c.h.b16 %v36
  %v340 = vunpack.c.l.b16 %v37
  %v341 = vunpack.c.h.b16 %v37
  %v342 = vpack.c.b16 %v334, %v334
  %v343 = vpack.c.b16 %v335, %v335
  %v344 = vpack.c.b16 %v336, %v336
  %v345 = vpack.c.b16 %v337, %v337
  %v346 = vpack.c.b16 %v338, %v338
  %v347 = vpack.c.b16 %v339, %v339
  %v348 = vpack.c.b16 %v340, %v340
  %v349 = vpack.c.b16 %v341, %v341
  %v351 = vsel %vm76, %v328, 0
  %v354 = vsel %vm76, %v329, 0
  %v357 = vsel %vm83, %v342, 0
  %v360 = vsel %vm83, %v343, 0
  %v363 = vsel %vm83, %v344, 0
  %v366 = vsel %vm83, %v345, 0
  %v369 = vsel %vm83, %v346, 0
  %v372 = vsel %vm83, %v347, 0
  %v375 = vsel %vm83, %v348, 0
  %v378 = vsel %vm83, %v349, 0
  %380 = vmatprep.subr.bf16.mxu0 %v360
  %381 = vmatpush1.bf16.msra.mxu0 %v357
  %382 = vmatprep.subr.bf16.mxu0 0
  %383 = vmatpush1.bf16.msra.mxu0 0
  %384 = vmatprep.subr.bf16.mxu0 0
  %385 = vmatpush1.bf16.msra.mxu0 0
  %386 = vmatprep.subr.bf16.mxu0 0
  %387 = vmatpush1.bf16.msra.mxu0 0
  %388 = vmatprep.subr.bf16.mxu0 0
  %389 = vmatpush1.bf16.msra.mxu0 0
  %390 = vmatprep.subr.bf16.mxu0 0
  %391 = vmatpush1.bf16.msra.mxu0 0
  %392 = vmatprep.subr.bf16.mxu0 0
  %393 = vmatpush1.bf16.msra.mxu0 0
  %394 = vmatprep.subr.bf16.mxu0 0
  %395 = vmatpush1.bf16.msra.mxu0 0
  %396 = vmatprep.subr.bf16.mxu0 0
  %397 = vmatpush1.bf16.msra.mxu0 0
  %398 = vmatprep.subr.bf16.mxu0 0
  %399 = vmatpush1.bf16.msra.mxu0 0
  %400 = vmatprep.subr.bf16.mxu0 0
  %401 = vmatpush1.bf16.msra.mxu0 0
  %402 = vmatprep.subr.bf16.mxu0 0
  %403 = vmatpush1.bf16.msra.mxu0 0
  %404 = vmatprep.subr.bf16.mxu0 0
  %405 = vmatpush1.bf16.msra.mxu0 0
  %406 = vmatprep.subr.bf16.mxu0 0
  %407 = vmatpush1.bf16.msra.mxu0 0
  %408 = vmatprep.subr.bf16.mxu0 0
  %409 = vmatpush1.bf16.msra.mxu0 0
  %410 = vmatprep.subr.bf16.mxu0 0
  %411 = vmatpush1.bf16.msra.mxu0 0
  %412 = vmatprep.mubr.bf16.mxu0 0
  %413 = vmatmul.mubr.bf16.gmra.mrb[0].mxu0 %v351
  %v414 = vpop.f32.mrb[0].mxu0
  %v415 = vadd.f32 %v143, %v414
  %v416 = vpop.f32.mrb[0].mxu0
  %v417 = vadd.f32 %v145, %v416
  %v418 = vpop.f32.mrb[0].mxu0
  %v419 = vadd.f32 %v147, %v418
  %v420 = vpop.f32.mrb[0].mxu0
  %v421 = vadd.f32 %v149, %v420
  %422 = vmatprep.mubr.bf16.mxu0 0
  %423 = vmatmul.mubr.bf16.gmra.mrb[0].mxu0 %v354
  %v424 = vpop.f32.mrb[0].mxu0
  %v425 = vadd.f32 %v153, %v424
  %v426 = vpop.f32.mrb[0].mxu0
  %v427 = vadd.f32 %v155, %v426
  %v428 = vpop.f32.mrb[0].mxu0
  %v429 = vadd.f32 %v157, %v428
  %v430 = vpop.f32.mrb[0].mxu0
  %v431 = vadd.f32 %v159, %v430
  %432 = vdwg.mxu0
  %433 = vmatprep.subr.bf16.mxu0 %v366
  %434 = vmatpush1.bf16.msra.mxu0 %v363
  %435 = vmatprep.subr.bf16.mxu0 0
  %436 = vmatpush1.bf16.msra.mxu0 0
  %437 = vmatprep.subr.bf16.mxu0 0
  %438 = vmatpush1.bf16.msra.mxu0 0
  %439 = vmatprep.subr.bf16.mxu0 0
  %440 = vmatpush1.bf16.msra.mxu0 0
  %441 = vmatprep.subr.bf16.mxu0 0
  %442 = vmatpush1.bf16.msra.mxu0 0
  %443 = vmatprep.subr.bf16.mxu0 0
  %444 = vmatpush1.bf16.msra.mxu0 0
  %445 = vmatprep.subr.bf16.mxu0 0
  %446 = vmatpush1.bf16.msra.mxu0 0
  %447 = vmatprep.subr.bf16.mxu0 0
  %448 = vmatpush1.bf16.msra.mxu0 0
  %449 = vmatprep.subr.bf16.mxu0 0
  %450 = vmatpush1.bf16.msra.mxu0 0
  %451 = vmatprep.subr.bf16.mxu0 0
  %452 = vmatpush1.bf16.msra.mxu0 0
  %453 = vmatprep.subr.bf16.mxu0 0
  %454 = vmatpush1.bf16.msra.mxu0 0
  %455 = vmatprep.subr.bf16.mxu0 0
  %456 = vmatpush1.bf16.msra.mxu0 0
  %457 = vmatprep.subr.bf16.mxu0 0
  %458 = vmatpush1.bf16.msra.mxu0 0
  %459 = vmatprep.subr.bf16.mxu0 0
  %460 = vmatpush1.bf16.msra.mxu0 0
  %461 = vmatprep.subr.bf16.mxu0 0
  %462 = vmatpush1.bf16.msra.mxu0 0
  %463 = vmatprep.subr.bf16.mxu0 0
  %464 = vmatpush1.bf16.msra.mxu0 0
  %465 = vmatprep.mubr.bf16.mxu0 0
  %466 = vmatmul.mubr.bf16.gmra.mrb[0].mxu0 %v351
  %v467 = vpop.f32.mrb[0].mxu0
  %v468 = vadd.f32 %v196, %v467
  %v469 = vpop.f32.mrb[0].mxu0
  %v470 = vadd.f32 %v198, %v469
  %v471 = vpop.f32.mrb[0].mxu0
  %v472 = vadd.f32 %v200, %v471
  %v473 = vpop.f32.mrb[0].mxu0
  %v474 = vadd.f32 %v202, %v473
  %475 = vmatprep.mubr.bf16.mxu0 0
  %476 = vmatmul.mubr.bf16.gmra.mrb[0].mxu0 %v354
  %v477 = vpop.f32.mrb[0].mxu0
  %v478 = vadd.f32 %v206, %v477
  %v479 = vpop.f32.mrb[0].mxu0
  %v480 = vadd.f32 %v208, %v479
  %v481 = vpop.f32.mrb[0].mxu0
  %v482 = vadd.f32 %v210, %v481
  %v483 = vpop.f32.mrb[0].mxu0
  %v484 = vadd.f32 %v212, %v483
  %485 = vdwg.mxu0
  %486 = vmatprep.subr.bf16.mxu0 %v372
  %487 = vmatpush1.bf16.msra.mxu0 %v369
  %488 = vmatprep.subr.bf16.mxu0 0
  %489 = vmatpush1.bf16.msra.mxu0 0
  %490 = vmatprep.subr.bf16.mxu0 0
  %491 = vmatpush1.bf16.msra.mxu0 0
  %492 = vmatprep.subr.bf16.mxu0 0
  %493 = vmatpush1.bf16.msra.mxu0 0
  %494 = vmatprep.subr.bf16.mxu0 0
  %495 = vmatpush1.bf16.msra.mxu0 0
  %496 = vmatprep.subr.bf16.mxu0 0
  %497 = vmatpush1.bf16.msra.mxu0 0
  %498 = vmatprep.subr.bf16.mxu0 0
  %499 = vmatpush1.bf16.msra.mxu0 0
  %500 = vmatprep.subr.bf16.mxu0 0
  %501 = vmatpush1.bf16.msra.mxu0 0
  %502 = vmatprep.subr.bf16.mxu0 0
  %503 = vmatpush1.bf16.msra.mxu0 0
  %504 = vmatprep.subr.bf16.mxu0 0
  %505 = vmatpush1.bf16.msra.mxu0 0
  %506 = vmatprep.subr.bf16.mxu0 0
  %507 = vmatpush1.bf16.msra.mxu0 0
  %508 = vmatprep.subr.bf16.mxu0 0
  %509 = vmatpush1.bf16.msra.mxu0 0
  %510 = vmatprep.subr.bf16.mxu0 0
  %511 = vmatpush1.bf16.msra.mxu0 0
  %512 = vmatprep.subr.bf16.mxu0 0
  %513 = vmatpush1.bf16.msra.mxu0 0
  %514 = vmatprep.subr.bf16.mxu0 0
  %515 = vmatpush1.bf16.msra.mxu0 0
  %516 = vmatprep.subr.bf16.mxu0 0
  %517 = vmatpush1.bf16.msra.mxu0 0
  %518 = vmatprep.mubr.bf16.mxu0 0
  %519 = vmatmul.mubr.bf16.gmra.mrb[0].mxu0 %v351
  %v520 = vpop.f32.mrb[0].mxu0
  %v521 = vadd.f32 %v249, %v520
  %v522 = vpop.f32.mrb[0].mxu0
  %v523 = vadd.f32 %v251, %v522
  %v524 = vpop.f32.mrb[0].mxu0
  %v525 = vadd.f32 %v253, %v524
  %v526 = vpop.f32.mrb[0].mxu0
  %v527 = vadd.f32 %v255, %v526
  %528 = vmatprep.mubr.bf16.mxu0 0
  %529 = vmatmul.mubr.bf16.gmra.mrb[0].mxu0 %v354
  %v530 = vpop.f32.mrb[0].mxu0
  %v531 = vadd.f32 %v259, %v530
  %v532 = vpop.f32.mrb[0].mxu0
  %v533 = vadd.f32 %v261, %v532
  %v534 = vpop.f32.mrb[0].mxu0
  %v535 = vadd.f32 %v263, %v534
  %v536 = vpop.f32.mrb[0].mxu0
  %v537 = vadd.f32 %v265, %v536
  %538 = vdwg.mxu0
  %539 = vmatprep.subr.bf16.mxu0 %v378
  %540 = vmatpush1.bf16.msra.mxu0 %v375
  %541 = vmatprep.subr.bf16.mxu0 0
  %542 = vmatpush1.bf16.msra.mxu0 0
  %543 = vmatprep.subr.bf16.mxu0 0
  %544 = vmatpush1.bf16.msra.mxu0 0
  %545 = vmatprep.subr.bf16.mxu0 0
  %546 = vmatpush1.bf16.msra.mxu0 0
  %547 = vmatprep.subr.bf16.mxu0 0
  %548 = vmatpush1.bf16.msra.mxu0 0
  %549 = vmatprep.subr.bf16.mxu0 0
  %550 = vmatpush1.bf16.msra.mxu0 0
  %551 = vmatprep.subr.bf16.mxu0 0
  %552 = vmatpush1.bf16.msra.mxu0 0
  %553 = vmatprep.subr.bf16.mxu0 0
  %554 = vmatpush1.bf16.msra.mxu0 0
  %555 = vmatprep.subr.bf16.mxu0 0
  %556 = vmatpush1.bf16.msra.mxu0 0
  %557 = vmatprep.subr.bf16.mxu0 0
  %558 = vmatpush1.bf16.msra.mxu0 0
  %559 = vmatprep.subr.bf16.mxu0 0
  %560 = vmatpush1.bf16.msra.mxu0 0
  %561 = vmatprep.subr.bf16.mxu0 0
  %562 = vmatpush1.bf16.msra.mxu0 0
  %563 = vmatprep.subr.bf16.mxu0 0
  %564 = vmatpush1.bf16.msra.mxu0 0
  %565 = vmatprep.subr.bf16.mxu0 0
  %566 = vmatpush1.bf16.msra.mxu0 0
  %567 = vmatprep.subr.bf16.mxu0 0
  %568 = vmatpush1.bf16.msra.mxu0 0
  %569 = vmatprep.subr.bf16.mxu0 0
  %570 = vmatpush1.bf16.msra.mxu0 0
  %571 = vmatprep.mubr.bf16.mxu0 0
  %572 = vmatmul.mubr.bf16.gmra.mrb[0].mxu0 %v351
  %v573 = vpop.f32.mrb[0].mxu0
  %v574 = vadd.f32 %v302, %v573
  %v575 = vpop.f32.mrb[0].mxu0
  %v576 = vadd.f32 %v304, %v575
  %v577 = vpop.f32.mrb[0].mxu0
  %v578 = vadd.f32 %v306, %v577
  %v579 = vpop.f32.mrb[0].mxu0
  %v580 = vadd.f32 %v308, %v579
  %581 = vmatprep.mubr.bf16.mxu0 0
  %582 = vmatmul.mubr.bf16.gmra.mrb[0].mxu0 %v354
  %v583 = vpop.f32.mrb[0].mxu0
  %v584 = vadd.f32 %v312, %v583
  %v585 = vpop.f32.mrb[0].mxu0
  %v586 = vadd.f32 %v314, %v585
  %v587 = vpop.f32.mrb[0].mxu0
  %v588 = vadd.f32 %v316, %v587
  %v589 = vpop.f32.mrb[0].mxu0
  %v590 = vadd.f32 %v318, %v589
  %591 = vdwg.mxu0
  %v592 = vld [vmem:[%s4] sm:$0xff]
  %v594 = vlaneseq
  %v595 = vshrl.u32 %v594, 7
  %v596 = vsub.s32 0, %v595
  %v597 = vrot.slane %v592, %v596
  %v598 = vlaneseq
  %v599 = vshrl.u32 %v598, 7
  %v600 = vsub.s32 1, %v599
  %v601 = vrot.slane %v592, %v600
  %v602 = vlaneseq
  %v603 = vshrl.u32 %v602, 7
  %v604 = vsub.s32 2, %v603
  %v605 = vrot.slane %v592, %v604
  %v606 = vlaneseq
  %v607 = vshrl.u32 %v606, 7
  %v608 = vsub.s32 3, %v607
  %v609 = vrot.slane %v592, %v608
  %v610 = vlaneseq
  %v611 = vshrl.u32 %v610, 7
  %v612 = vsub.s32 4, %v611
  %v613 = vrot.slane %v592, %v612
  %v614 = vlaneseq
  %v615 = vshrl.u32 %v614, 7
  %v616 = vsub.s32 5, %v615
  %v617 = vrot.slane %v592, %v616
  %v618 = vlaneseq
  %v619 = vshrl.u32 %v618, 7
  %v620 = vsub.s32 6, %v619
  %v621 = vrot.slane %v592, %v620
  %v622 = vlaneseq
  %v623 = vshrl.u32 %v622, 7
  %v624 = vsub.s32 7, %v623
  %v625 = vrot.slane %v592, %v624
  %v634 = vmul.f32 %v415, %v597
  %v635 = vmul.f32 %v417, %v601
  %v636 = vmul.f32 %v468, %v605
  %v637 = vmul.f32 %v470, %v609
  %v638 = vmul.f32 %v521, %v613
  %v639 = vmul.f32 %v523, %v617
  %v640 = vmul.f32 %v574, %v621
  %v641 = vmul.f32 %v576, %v625
  %v642 = vmul.f32 %v419, %v597
  %v643 = vmul.f32 %v421, %v601
  %v644 = vmul.f32 %v472, %v605
  %v645 = vmul.f32 %v474, %v609
  %v646 = vmul.f32 %v525, %v613
  %v647 = vmul.f32 %v527, %v617
  %v648 = vmul.f32 %v578, %v621
  %v649 = vmul.f32 %v580, %v625
  %v650 = vmul.f32 %v425, %v597
  %v651 = vmul.f32 %v427, %v601
  %v652 = vmul.f32 %v478, %v605
  %v653 = vmul.f32 %v480, %v609
  %v654 = vmul.f32 %v531, %v613
  %v655 = vmul.f32 %v533, %v617
  %v656 = vmul.f32 %v584, %v621
  %v657 = vmul.f32 %v586, %v625
  %v658 = vmul.f32 %v429, %v597
  %v659 = vmul.f32 %v431, %v601
  %v660 = vmul.f32 %v482, %v605
  %v661 = vmul.f32 %v484, %v609
  %v662 = vmul.f32 %v535, %v613
  %v663 = vmul.f32 %v537, %v617
  %v664 = vmul.f32 %v588, %v621
  %v665 = vmul.f32 %v590, %v625
  %v666 = vld [vmem:[%s5] sm:$0xff]
  %v668 = vlaneseq
  %v669 = vshrl.u32 %v668, 7
  %v670 = vsub.s32 0, %v669
  %v671 = vrot.slane %v666, %v670
  %v672 = vlaneseq
  %v673 = vshrl.u32 %v672, 7
  %v674 = vsub.s32 1, %v673
  %v675 = vrot.slane %v666, %v674
  %v676 = vlaneseq
  %v677 = vshrl.u32 %v676, 7
  %v678 = vsub.s32 2, %v677
  %v679 = vrot.slane %v666, %v678
  %v680 = vlaneseq
  %v681 = vshrl.u32 %v680, 7
  %v682 = vsub.s32 3, %v681
  %v683 = vrot.slane %v666, %v682
  %v684 = vlaneseq
  %v685 = vshrl.u32 %v684, 7
  %v686 = vsub.s32 4, %v685
  %v687 = vrot.slane %v666, %v686
  %v688 = vlaneseq
  %v689 = vshrl.u32 %v688, 7
  %v690 = vsub.s32 5, %v689
  %v691 = vrot.slane %v666, %v690
  %v692 = vlaneseq
  %v693 = vshrl.u32 %v692, 7
  %v694 = vsub.s32 6, %v693
  %v695 = vrot.slane %v666, %v694
  %v696 = vlaneseq
  %v697 = vshrl.u32 %v696, 7
  %v698 = vsub.s32 7, %v697
  %v699 = vrot.slane %v666, %v698
  %v708 = vadd.f32 %v634, %v671
  %v709 = vadd.f32 %v635, %v675
  %v710 = vadd.f32 %v636, %v679
  %v711 = vadd.f32 %v637, %v683
  %v712 = vadd.f32 %v638, %v687
  %v713 = vadd.f32 %v639, %v691
  %v714 = vadd.f32 %v640, %v695
  %v715 = vadd.f32 %v641, %v699
  %v716 = vadd.f32 %v642, %v671
  %v717 = vadd.f32 %v643, %v675
  %v718 = vadd.f32 %v644, %v679
  %v719 = vadd.f32 %v645, %v683
  %v720 = vadd.f32 %v646, %v687
  %v721 = vadd.f32 %v647, %v691
  %v722 = vadd.f32 %v648, %v695
  %v723 = vadd.f32 %v649, %v699
  %v724 = vadd.f32 %v650, %v671
  %v725 = vadd.f32 %v651, %v675
  %v726 = vadd.f32 %v652, %v679
  %v727 = vadd.f32 %v653, %v683
  %v728 = vadd.f32 %v654, %v687
  %v729 = vadd.f32 %v655, %v691
  %v730 = vadd.f32 %v656, %v695
  %v731 = vadd.f32 %v657, %v699
  %v732 = vadd.f32 %v658, %v671
  %v733 = vadd.f32 %v659, %v675
  %v734 = vadd.f32 %v660, %v679
  %v735 = vadd.f32 %v661, %v683
  %v736 = vadd.f32 %v662, %v687
  %v737 = vadd.f32 %v663, %v691
  %v738 = vadd.f32 %v664, %v695
  %v739 = vadd.f32 %v665, %v699
  %v740 = vmax.f32 %v708, 0.0
  %v741 = vmax.f32 %v709, 0.0
  %v742 = vmax.f32 %v710, 0.0
  %v743 = vmax.f32 %v711, 0.0
  %v744 = vmax.f32 %v712, 0.0
  %v745 = vmax.f32 %v713, 0.0
  %v746 = vmax.f32 %v714, 0.0
  %v747 = vmax.f32 %v715, 0.0
  %v748 = vmax.f32 %v716, 0.0
  %v749 = vmax.f32 %v717, 0.0
  %v750 = vmax.f32 %v718, 0.0
  %v751 = vmax.f32 %v719, 0.0
  %v752 = vmax.f32 %v720, 0.0
  %v753 = vmax.f32 %v721, 0.0
  %v754 = vmax.f32 %v722, 0.0
  %v755 = vmax.f32 %v723, 0.0
  %v756 = vmax.f32 %v724, 0.0
  %v757 = vmax.f32 %v725, 0.0
  %v758 = vmax.f32 %v726, 0.0
  %v759 = vmax.f32 %v727, 0.0
  %v760 = vmax.f32 %v728, 0.0
  %v761 = vmax.f32 %v729, 0.0
  %v762 = vmax.f32 %v730, 0.0
  %v763 = vmax.f32 %v731, 0.0
  %v764 = vmax.f32 %v732, 0.0
  %v765 = vmax.f32 %v733, 0.0
  %v766 = vmax.f32 %v734, 0.0
  %v767 = vmax.f32 %v735, 0.0
  %v768 = vmax.f32 %v736, 0.0
  %v769 = vmax.f32 %v737, 0.0
  %v770 = vmax.f32 %v738, 0.0
  %v771 = vmax.f32 %v739, 0.0
  %v772 = vpack.c.bf16 %v748, %v740
  %v773 = vpack.c.bf16 %v749, %v741
  %v774 = vpack.c.bf16 %v750, %v742
  %v775 = vpack.c.bf16 %v751, %v743
  %v776 = vpack.c.bf16 %v752, %v744
  %v777 = vpack.c.bf16 %v753, %v745
  %v778 = vpack.c.bf16 %v754, %v746
  %v779 = vpack.c.bf16 %v755, %v747
  %v780 = vpack.c.bf16 %v764, %v756
  %v781 = vpack.c.bf16 %v765, %v757
  %v782 = vpack.c.bf16 %v766, %v758
  %v783 = vpack.c.bf16 %v767, %v759
  %v784 = vpack.c.bf16 %v768, %v760
  %v785 = vpack.c.bf16 %v769, %v761
  %v786 = vpack.c.bf16 %v770, %v762
  %v787 = vpack.c.bf16 %v771, %v763
  %v788 = vld [vmem:[%s6] sm:$0xf]
  %v789 = vld [vmem:[%s6 + $0x4] sm:$0xf]
  %v790 = vld [vmem:[%s6 + $0x8] sm:$0xf]
  %v791 = vld [vmem:[%s6 + $0xc] sm:$0xf]
  %v792 = vld [vmem:[%s6 + $0x10] sm:$0xf]
  %v793 = vld [vmem:[%s6 + $0x14] sm:$0xf]
  %v794 = vld [vmem:[%s6 + $0x18] sm:$0xf]
  %v795 = vld [vmem:[%s6 + $0x1c] sm:$0xf]
  %v796 = vld [vmem:[%s6 + $0x20] sm:$0xf]
  %v797 = vld [vmem:[%s6 + $0x24] sm:$0xf]
  %v798 = vld [vmem:[%s6 + $0x28] sm:$0xf]
  %v799 = vld [vmem:[%s6 + $0x2c] sm:$0xf]
  %v800 = vld [vmem:[%s6 + $0x30] sm:$0xf]
  %v801 = vld [vmem:[%s6 + $0x34] sm:$0xf]
  %v802 = vld [vmem:[%s6 + $0x38] sm:$0xf]
  %v803 = vld [vmem:[%s6 + $0x3c] sm:$0xf]
  %v804 = vld [vmem:[%s6 + $0x40] sm:$0xf]
  %v805 = vld [vmem:[%s6 + $0x44] sm:$0xf]
  %v806 = vld [vmem:[%s6 + $0x48] sm:$0xf]
  %v807 = vld [vmem:[%s6 + $0x4c] sm:$0xf]
  %v808 = vld [vmem:[%s6 + $0x50] sm:$0xf]
  %v809 = vld [vmem:[%s6 + $0x54] sm:$0xf]
  %v810 = vld [vmem:[%s6 + $0x58] sm:$0xf]
  %v811 = vld [vmem:[%s6 + $0x5c] sm:$0xf]
  %v812 = vld [vmem:[%s6 + $0x60] sm:$0xf]
  %v813 = vld [vmem:[%s6 + $0x64] sm:$0xf]
  %v814 = vld [vmem:[%s6 + $0x68] sm:$0xf]
  %v815 = vld [vmem:[%s6 + $0x6c] sm:$0xf]
  %v816 = vld [vmem:[%s6 + $0x70] sm:$0xf]
  %v817 = vld [vmem:[%s6 + $0x74] sm:$0xf]
  %v818 = vld [vmem:[%s6 + $0x78] sm:$0xf]
  %v819 = vld [vmem:[%s6 + $0x7c] sm:$0xf]
  %v820 = vld [vmem:[%s6 + $0x80] sm:$0xf]
  %v821 = vld [vmem:[%s6 + $0x84] sm:$0xf]
  %v822 = vld [vmem:[%s6 + $0x88] sm:$0xf]
  %v823 = vld [vmem:[%s6 + $0x8c] sm:$0xf]
  %v824 = vld [vmem:[%s6 + $0x90] sm:$0xf]
  %v825 = vld [vmem:[%s6 + $0x94] sm:$0xf]
  %v826 = vld [vmem:[%s6 + $0x98] sm:$0xf]
  %v827 = vld [vmem:[%s6 + $0x9c] sm:$0xf]
  %v828 = vld [vmem:[%s6 + $0xa0] sm:$0xf]
  %v829 = vld [vmem:[%s6 + $0xa4] sm:$0xf]
  %v830 = vld [vmem:[%s6 + $0xa8] sm:$0xf]
  %v831 = vld [vmem:[%s6 + $0xac] sm:$0xf]
  %v832 = vld [vmem:[%s6 + $0xb0] sm:$0xf]
  %v833 = vld [vmem:[%s6 + $0xb4] sm:$0xf]
  %v834 = vld [vmem:[%s6 + $0xb8] sm:$0xf]
  %v835 = vld [vmem:[%s6 + $0xbc] sm:$0xf]
  %v836 = vld [vmem:[%s6 + $0xc0] sm:$0xf]
  %v837 = vld [vmem:[%s6 + $0xc4] sm:$0xf]
  %v838 = vld [vmem:[%s6 + $0xc8] sm:$0xf]
  %v839 = vld [vmem:[%s6 + $0xcc] sm:$0xf]
  %v840 = vld [vmem:[%s6 + $0xd0] sm:$0xf]
  %v841 = vld [vmem:[%s6 + $0xd4] sm:$0xf]
  %v842 = vld [vmem:[%s6 + $0xd8] sm:$0xf]
  %v843 = vld [vmem:[%s6 + $0xdc] sm:$0xf]
  %v844 = vld [vmem:[%s6 + $0xe0] sm:$0xf]
  %v845 = vld [vmem:[%s6 + $0xe4] sm:$0xf]
  %v846 = vld [vmem:[%s6 + $0xe8] sm:$0xf]
  %v847 = vld [vmem:[%s6 + $0xec] sm:$0xf]
  %v848 = vld [vmem:[%s6 + $0xf0] sm:$0xf]
  %v849 = vld [vmem:[%s6 + $0xf4] sm:$0xf]
  %v850 = vld [vmem:[%s6 + $0xf8] sm:$0xf]
  %v851 = vld [vmem:[%s6 + $0xfc] sm:$0xf]
  %v852 = vld [vmem:[%s6 + $0x100] sm:$0xf]
  %v853 = vld [vmem:[%s6 + $0x104] sm:$0xf]
  %v854 = vld [vmem:[%s6 + $0x108] sm:$0xf]
  %v855 = vld [vmem:[%s6 + $0x10c] sm:$0xf]
  %v856 = vld [vmem:[%s6 + $0x110] sm:$0xf]
  %v857 = vld [vmem:[%s6 + $0x114] sm:$0xf]
  %v858 = vld [vmem:[%s6 + $0x118] sm:$0xf]
  %v859 = vld [vmem:[%s6 + $0x11c] sm:$0xf]
  %v860 = vld [vmem:[%s6 + $0x120] sm:$0xf]
  %v861 = vld [vmem:[%s6 + $0x124] sm:$0xf]
  %v862 = vld [vmem:[%s6 + $0x128] sm:$0xf]
  %v863 = vld [vmem:[%s6 + $0x12c] sm:$0xf]
  %v864 = vld [vmem:[%s6 + $0x130] sm:$0xf]
  %v865 = vld [vmem:[%s6 + $0x134] sm:$0xf]
  %v866 = vld [vmem:[%s6 + $0x138] sm:$0xf]
  %v867 = vld [vmem:[%s6 + $0x13c] sm:$0xf]
  %v868 = vld [vmem:[%s6 + $0x140] sm:$0xf]
  %v869 = vld [vmem:[%s6 + $0x144] sm:$0xf]
  %v870 = vld [vmem:[%s6 + $0x148] sm:$0xf]
  %v871 = vld [vmem:[%s6 + $0x14c] sm:$0xf]
  %v872 = vld [vmem:[%s6 + $0x150] sm:$0xf]
  %v873 = vld [vmem:[%s6 + $0x154] sm:$0xf]
  %v874 = vld [vmem:[%s6 + $0x158] sm:$0xf]
  %v875 = vld [vmem:[%s6 + $0x15c] sm:$0xf]
  %v876 = vld [vmem:[%s6 + $0x160] sm:$0xf]
  %v877 = vld [vmem:[%s6 + $0x164] sm:$0xf]
  %v878 = vld [vmem:[%s6 + $0x168] sm:$0xf]
  %v879 = vld [vmem:[%s6 + $0x16c] sm:$0xf]
  %v880 = vld [vmem:[%s6 + $0x170] sm:$0xf]
  %v881 = vld [vmem:[%s6 + $0x174] sm:$0xf]
  %v882 = vld [vmem:[%s6 + $0x178] sm:$0xf]
  %v883 = vld [vmem:[%s6 + $0x17c] sm:$0xf]
  %v884 = vld [vmem:[%s6 + $0x180] sm:$0xf]
  %v885 = vld [vmem:[%s6 + $0x184] sm:$0xf]
  %v886 = vld [vmem:[%s6 + $0x188] sm:$0xf]
  %v887 = vld [vmem:[%s6 + $0x18c] sm:$0xf]
  %v888 = vld [vmem:[%s6 + $0x190] sm:$0xf]
  %v889 = vld [vmem:[%s6 + $0x194] sm:$0xf]
  %v890 = vld [vmem:[%s6 + $0x198] sm:$0xf]
  %v891 = vld [vmem:[%s6 + $0x19c] sm:$0xf]
  %v892 = vld [vmem:[%s6 + $0x1a0] sm:$0xf]
  %v893 = vld [vmem:[%s6 + $0x1a4] sm:$0xf]
  %v894 = vld [vmem:[%s6 + $0x1a8] sm:$0xf]
  %v895 = vld [vmem:[%s6 + $0x1ac] sm:$0xf]
  %v896 = vld [vmem:[%s6 + $0x1b0] sm:$0xf]
  %v897 = vld [vmem:[%s6 + $0x1b4] sm:$0xf]
  %v898 = vld [vmem:[%s6 + $0x1b8] sm:$0xf]
  %v899 = vld [vmem:[%s6 + $0x1bc] sm:$0xf]
  %v900 = vld [vmem:[%s6 + $0x1c0] sm:$0xf]
  %v901 = vld [vmem:[%s6 + $0x1c4] sm:$0xf]
  %v902 = vld [vmem:[%s6 + $0x1c8] sm:$0xf]
  %v903 = vld [vmem:[%s6 + $0x1cc] sm:$0xf]
  %v904 = vld [vmem:[%s6 + $0x1d0] sm:$0xf]
  %v905 = vld [vmem:[%s6 + $0x1d4] sm:$0xf]
  %v906 = vld [vmem:[%s6 + $0x1d8] sm:$0xf]
  %v907 = vld [vmem:[%s6 + $0x1dc] sm:$0xf]
  %v908 = vld [vmem:[%s6 + $0x1e0] sm:$0xf]
  %v909 = vld [vmem:[%s6 + $0x1e4] sm:$0xf]
  %v910 = vld [vmem:[%s6 + $0x1e8] sm:$0xf]
  %v911 = vld [vmem:[%s6 + $0x1ec] sm:$0xf]
  %v912 = vld [vmem:[%s6 + $0x1f0] sm:$0xf]
  %v913 = vld [vmem:[%s6 + $0x1f4] sm:$0xf]
  %v914 = vld [vmem:[%s6 + $0x1f8] sm:$0xf]
  %v915 = vld [vmem:[%s6 + $0x1fc] sm:$0xf]
  %v916 = vld [vmem:[%s7] sm:$0x1]
  %v918 = vlaneseq
  %v919 = vshrl.u32 %v918, 7
  %v920 = vsub.s32 0, %v919
  %v921 = vrot.slane %v916, %v920
  %v1051 = vunpack.c.l.b16 %v788
  %v1052 = vunpack.c.l.b16 %v789
  %v1053 = vunpack.c.l.b16 %v790
  %v1054 = vunpack.c.l.b16 %v791
  %v1055 = vunpack.c.l.b16 %v792
  %v1056 = vunpack.c.l.b16 %v793
  %v1057 = vunpack.c.l.b16 %v794
  %v1058 = vunpack.c.l.b16 %v795
  %v1059 = vunpack.c.l.b16 %v796
  %v1060 = vunpack.c.l.b16 %v797
  %v1061 = vunpack.c.l.b16 %v798
  %v1062 = vunpack.c.l.b16 %v799
  %v1063 = vunpack.c.l.b16 %v800
  %v1064 = vunpack.c.l.b16 %v801
  %v1065 = vunpack.c.l.b16 %v802
  %v1066 = vunpack.c.l.b16 %v803
  %v1067 = vunpack.c.l.b16 %v804
  %v1068 = vunpack.c.l.b16 %v805
  %v1069 = vunpack.c.l.b16 %v806
  %v1070 = vunpack.c.l.b16 %v807
  %v1071 = vunpack.c.l.b16 %v808
  %v1072 = vunpack.c.l.b16 %v809
  %v1073 = vunpack.c.l.b16 %v810
  %v1074 = vunpack.c.l.b16 %v811
  %v1075 = vunpack.c.l.b16 %v812
  %v1076 = vunpack.c.l.b16 %v813
  %v1077 = vunpack.c.l.b16 %v814
  %v1078 = vunpack.c.l.b16 %v815
  %v1079 = vunpack.c.l.b16 %v816
  %v1080 = vunpack.c.l.b16 %v817
  %v1081 = vunpack.c.l.b16 %v818
  %v1082 = vunpack.c.l.b16 %v819
  %v1083 = vunpack.c.l.b16 %v820
  %v1084 = vunpack.c.l.b16 %v821
  %v1085 = vunpack.c.l.b16 %v822
  %v1086 = vunpack.c.l.b16 %v823
  %v1087 = vunpack.c.l.b16 %v824
  %v1088 = vunpack.c.l.b16 %v825
  %v1089 = vunpack.c.l.b16 %v826
  %v1090 = vunpack.c.l.b16 %v827
  %v1091 = vunpack.c.l.b16 %v828
  %v1092 = vunpack.c.l.b16 %v829
  %v1093 = vunpack.c.l.b16 %v830
  %v1094 = vunpack.c.l.b16 %v831
  %v1095 = vunpack.c.l.b16 %v832
  %v1096 = vunpack.c.l.b16 %v833
  %v1097 = vunpack.c.l.b16 %v834
  %v1098 = vunpack.c.l.b16 %v835
  %v1099 = vunpack.c.l.b16 %v836
  %v1100 = vunpack.c.l.b16 %v837
  %v1101 = vunpack.c.l.b16 %v838
  %v1102 = vunpack.c.l.b16 %v839
  %v1103 = vunpack.c.l.b16 %v840
  %v1104 = vunpack.c.l.b16 %v841
  %v1105 = vunpack.c.l.b16 %v842
  %v1106 = vunpack.c.l.b16 %v843
  %v1107 = vunpack.c.l.b16 %v844
  %v1108 = vunpack.c.l.b16 %v845
  %v1109 = vunpack.c.l.b16 %v846
  %v1110 = vunpack.c.l.b16 %v847
  %v1111 = vunpack.c.l.b16 %v848
  %v1112 = vunpack.c.l.b16 %v849
  %v1113 = vunpack.c.l.b16 %v850
  %v1114 = vunpack.c.l.b16 %v851
  %v1115 = vunpack.c.l.b16 %v852
  %v1116 = vunpack.c.l.b16 %v853
  %v1117 = vunpack.c.l.b16 %v854
  %v1118 = vunpack.c.l.b16 %v855
  %v1119 = vunpack.c.l.b16 %v856
  %v1120 = vunpack.c.l.b16 %v857
  %v1121 = vunpack.c.l.b16 %v858
  %v1122 = vunpack.c.l.b16 %v859
  %v1123 = vunpack.c.l.b16 %v860
  %v1124 = vunpack.c.l.b16 %v861
  %v1125 = vunpack.c.l.b16 %v862
  %v1126 = vunpack.c.l.b16 %v863
  %v1127 = vunpack.c.l.b16 %v864
  %v1128 = vunpack.c.l.b16 %v865
  %v1129 = vunpack.c.l.b16 %v866
  %v1130 = vunpack.c.l.b16 %v867
  %v1131 = vunpack.c.l.b16 %v868
  %v1132 = vunpack.c.l.b16 %v869
  %v1133 = vunpack.c.l.b16 %v870
  %v1134 = vunpack.c.l.b16 %v871
  %v1135 = vunpack.c.l.b16 %v872
  %v1136 = vunpack.c.l.b16 %v873
  %v1137 = vunpack.c.l.b16 %v874
  %v1138 = vunpack.c.l.b16 %v875
  %v1139 = vunpack.c.l.b16 %v876
  %v1140 = vunpack.c.l.b16 %v877
  %v1141 = vunpack.c.l.b16 %v878
  %v1142 = vunpack.c.l.b16 %v879
  %v1143 = vunpack.c.l.b16 %v880
  %v1144 = vunpack.c.l.b16 %v881
  %v1145 = vunpack.c.l.b16 %v882
  %v1146 = vunpack.c.l.b16 %v883
  %v1147 = vunpack.c.l.b16 %v884
  %v1148 = vunpack.c.l.b16 %v885
  %v1149 = vunpack.c.l.b16 %v886
  %v1150 = vunpack.c.l.b16 %v887
  %v1151 = vunpack.c.l.b16 %v888
  %v1152 = vunpack.c.l.b16 %v889
  %v1153 = vunpack.c.l.b16 %v890
  %v1154 = vunpack.c.l.b16 %v891
  %v1155 = vunpack.c.l.b16 %v892
  %v1156 = vunpack.c.l.b16 %v893
  %v1157 = vunpack.c.l.b16 %v894
  %v1158 = vunpack.c.l.b16 %v895
  %v1159 = vunpack.c.l.b16 %v896
  %v1160 = vunpack.c.l.b16 %v897
  %v1161 = vunpack.c.l.b16 %v898
  %v1162 = vunpack.c.l.b16 %v899
  %v1163 = vunpack.c.l.b16 %v900
  %v1164 = vunpack.c.l.b16 %v901
  %v1165 = vunpack.c.l.b16 %v902
  %v1166 = vunpack.c.l.b16 %v903
  %v1167 = vunpack.c.l.b16 %v904
  %v1168 = vunpack.c.l.b16 %v905
  %v1169 = vunpack.c.l.b16 %v906
  %v1170 = vunpack.c.l.b16 %v907
  %v1171 = vunpack.c.l.b16 %v908
  %v1172 = vunpack.c.l.b16 %v909
  %v1173 = vunpack.c.l.b16 %v910
  %v1174 = vunpack.c.l.b16 %v911
  %v1175 = vunpack.c.l.b16 %v912
  %v1176 = vunpack.c.l.b16 %v913
  %v1177 = vunpack.c.l.b16 %v914
  %v1178 = vunpack.c.l.b16 %v915
  %v1179 = vpack.c.b16 %v1052, %v1051
  %v1180 = vpack.c.b16 %v1054, %v1053
  %v1181 = vpack.c.b16 %v1056, %v1055
  %v1182 = vpack.c.b16 %v1058, %v1057
  %v1183 = vpack.c.b16 %v1060, %v1059
  %v1184 = vpack.c.b16 %v1062, %v1061
  %v1185 = vpack.c.b16 %v1064, %v1063
  %v1186 = vpack.c.b16 %v1066, %v1065
  %v1187 = vpack.c.b16 %v1068, %v1067
  %v1188 = vpack.c.b16 %v1070, %v1069
  %v1189 = vpack.c.b16 %v1072, %v1071
  %v1190 = vpack.c.b16 %v1074, %v1073
  %v1191 = vpack.c.b16 %v1076, %v1075
  %v1192 = vpack.c.b16 %v1078, %v1077
  %v1193 = vpack.c.b16 %v1080, %v1079
  %v1194 = vpack.c.b16 %v1082, %v1081
  %v1195 = vpack.c.b16 %v1084, %v1083
  %v1196 = vpack.c.b16 %v1086, %v1085
  %v1197 = vpack.c.b16 %v1088, %v1087
  %v1198 = vpack.c.b16 %v1090, %v1089
  %v1199 = vpack.c.b16 %v1092, %v1091
  %v1200 = vpack.c.b16 %v1094, %v1093
  %v1201 = vpack.c.b16 %v1096, %v1095
  %v1202 = vpack.c.b16 %v1098, %v1097
  %v1203 = vpack.c.b16 %v1100, %v1099
  %v1204 = vpack.c.b16 %v1102, %v1101
  %v1205 = vpack.c.b16 %v1104, %v1103
  %v1206 = vpack.c.b16 %v1106, %v1105
  %v1207 = vpack.c.b16 %v1108, %v1107
  %v1208 = vpack.c.b16 %v1110, %v1109
  %v1209 = vpack.c.b16 %v1112, %v1111
  %v1210 = vpack.c.b16 %v1114, %v1113
  %v1211 = vpack.c.b16 %v1116, %v1115
  %v1212 = vpack.c.b16 %v1118, %v1117
  %v1213 = vpack.c.b16 %v1120, %v1119
  %v1214 = vpack.c.b16 %v1122, %v1121
  %v1215 = vpack.c.b16 %v1124, %v1123
  %v1216 = vpack.c.b16 %v1126, %v1125
  %v1217 = vpack.c.b16 %v1128, %v1127
  %v1218 = vpack.c.b16 %v1130, %v1129
  %v1219 = vpack.c.b16 %v1132, %v1131
  %v1220 = vpack.c.b16 %v1134, %v1133
  %v1221 = vpack.c.b16 %v1136, %v1135
  %v1222 = vpack.c.b16 %v1138, %v1137
  %v1223 = vpack.c.b16 %v1140, %v1139
  %v1224 = vpack.c.b16 %v1142, %v1141
  %v1225 = vpack.c.b16 %v1144, %v1143
  %v1226 = vpack.c.b16 %v1146, %v1145
  %v1227 = vpack.c.b16 %v1148, %v1147
  %v1228 = vpack.c.b16 %v1150, %v1149
  %v1229 = vpack.c.b16 %v1152, %v1151
  %v1230 = vpack.c.b16 %v1154, %v1153
  %v1231 = vpack.c.b16 %v1156, %v1155
  %v1232 = vpack.c.b16 %v1158, %v1157
  %v1233 = vpack.c.b16 %v1160, %v1159
  %v1234 = vpack.c.b16 %v1162, %v1161
  %v1235 = vpack.c.b16 %v1164, %v1163
  %v1236 = vpack.c.b16 %v1166, %v1165
  %v1237 = vpack.c.b16 %v1168, %v1167
  %v1238 = vpack.c.b16 %v1170, %v1169
  %v1239 = vpack.c.b16 %v1172, %v1171
  %v1240 = vpack.c.b16 %v1174, %v1173
  %v1241 = vpack.c.b16 %v1176, %v1175
  %v1242 = vpack.c.b16 %v1178, %v1177
  %1307 = vmatprep.subr.bf16.mxu0 0
  %1308 = vmatpush1.bf16.msra.mxu0 %v1179
  %1309 = vmatprep.subr.bf16.mxu0 0
  %1310 = vmatpush1.bf16.msra.mxu0 %v1180
  %1311 = vmatprep.subr.bf16.mxu0 0
  %1312 = vmatpush1.bf16.msra.mxu0 %v1181
  %1313 = vmatprep.subr.bf16.mxu0 0
  %1314 = vmatpush1.bf16.msra.mxu0 %v1182
  %1315 = vmatprep.subr.bf16.mxu0 0
  %1316 = vmatpush1.bf16.msra.mxu0 %v1183
  %1317 = vmatprep.subr.bf16.mxu0 0
  %1318 = vmatpush1.bf16.msra.mxu0 %v1184
  %1319 = vmatprep.subr.bf16.mxu0 0
  %1320 = vmatpush1.bf16.msra.mxu0 %v1185
  %1321 = vmatprep.subr.bf16.mxu0 0
  %1322 = vmatpush1.bf16.msra.mxu0 %v1186
  %1323 = vmatprep.subr.bf16.mxu0 0
  %1324 = vmatpush1.bf16.msra.mxu0 %v1187
  %1325 = vmatprep.subr.bf16.mxu0 0
  %1326 = vmatpush1.bf16.msra.mxu0 %v1188
  %1327 = vmatprep.subr.bf16.mxu0 0
  %1328 = vmatpush1.bf16.msra.mxu0 %v1189
  %1329 = vmatprep.subr.bf16.mxu0 0
  %1330 = vmatpush1.bf16.msra.mxu0 %v1190
  %1331 = vmatprep.subr.bf16.mxu0 0
  %1332 = vmatpush1.bf16.msra.mxu0 %v1191
  %1333 = vmatprep.subr.bf16.mxu0 0
  %1334 = vmatpush1.bf16.msra.mxu0 %v1192
  %1335 = vmatprep.subr.bf16.mxu0 0
  %1336 = vmatpush1.bf16.msra.mxu0 %v1193
  %1337 = vmatprep.subr.bf16.mxu0 0
  %1338 = vmatpush1.bf16.msra.mxu0 %v1194
  %1339 = vmatprep.mubr.bf16.mxu0 %v773
  %1340 = vmatmul.mubr.bf16.gmra.mrb[0].mxu0 %v772
  %v1341 = vpop.f32.mrb[0].mxu0
  %v1342 = vadd.f32 %v921, %v1341
  %v1343 = vpop.f32.mrb[0].mxu0
  %v1344 = vpop.f32.mrb[0].mxu0
  %v1345 = vadd.f32 %v921, %v1344
  %v1346 = vpop.f32.mrb[0].mxu0
  %1347 = vmatprep.mubr.bf16.mxu0 %v781
  %1348 = vmatmul.mubr.bf16.gmra.mrb[0].mxu0 %v780
  %v1349 = vpop.f32.mrb[0].mxu0
  %v1350 = vadd.f32 %v921, %v1349
  %v1351 = vpop.f32.mrb[0].mxu0
  %v1352 = vpop.f32.mrb[0].mxu0
  %v1353 = vadd.f32 %v921, %v1352
  %v1354 = vpop.f32.mrb[0].mxu0
  %1355 = vdwg.mxu0
  %1356 = vmatprep.subr.bf16.mxu0 0
  %1357 = vmatpush1.bf16.msra.mxu0 %v1195
  %1358 = vmatprep.subr.bf16.mxu0 0
  %1359 = vmatpush1.bf16.msra.mxu0 %v1196
  %1360 = vmatprep.subr.bf16.mxu0 0
  %1361 = vmatpush1.bf16.msra.mxu0 %v1197
  %1362 = vmatprep.subr.bf16.mxu0 0
  %1363 = vmatpush1.bf16.msra.mxu0 %v1198
  %1364 = vmatprep.subr.bf16.mxu0 0
  %1365 = vmatpush1.bf16.msra.mxu0 %v1199
  %1366 = vmatprep.subr.bf16.mxu0 0
  %1367 = vmatpush1.bf16.msra.mxu0 %v1200
  %1368 = vmatprep.subr.bf16.mxu0 0
  %1369 = vmatpush1.bf16.msra.mxu0 %v1201
  %1370 = vmatprep.subr.bf16.mxu0 0
  %1371 = vmatpush1.bf16.msra.mxu0 %v1202
  %1372 = vmatprep.subr.bf16.mxu0 0
  %1373 = vmatpush1.bf16.msra.mxu0 %v1203
  %1374 = vmatprep.subr.bf16.mxu0 0
  %1375 = vmatpush1.bf16.msra.mxu0 %v1204
  %1376 = vmatprep.subr.bf16.mxu0 0
  %1377 = vmatpush1.bf16.msra.mxu0 %v1205
  %1378 = vmatprep.subr.bf16.mxu0 0
  %1379 = vmatpush1.bf16.msra.mxu0 %v1206
  %1380 = vmatprep.subr.bf16.mxu0 0
  %1381 = vmatpush1.bf16.msra.mxu0 %v1207
  %1382 = vmatprep.subr.bf16.mxu0 0
  %1383 = vmatpush1.bf16.msra.mxu0 %v1208
  %1384 = vmatprep.subr.bf16.mxu0 0
  %1385 = vmatpush1.bf16.msra.mxu0 %v1209
  %1386 = vmatprep.subr.bf16.mxu0 0
  %1387 = vmatpush1.bf16.msra.mxu0 %v1210
  %1388 = vmatprep.mubr.bf16.mxu0 %v775
  %1389 = vmatmul.mubr.bf16.gmra.mrb[0].mxu0 %v774
  %v1390 = vpop.f32.mrb[0].mxu0
  %v1391 = vadd.f32 %v1342, %v1390
  %v1392 = vpop.f32.mrb[0].mxu0
  %v1393 = vpop.f32.mrb[0].mxu0
  %v1394 = vadd.f32 %v1345, %v1393
  %v1395 = vpop.f32.mrb[0].mxu0
  %1396 = vmatprep.mubr.bf16.mxu0 %v783
  %1397 = vmatmul.mubr.bf16.gmra.mrb[0].mxu0 %v782
  %v1398 = vpop.f32.mrb[0].mxu0
  %v1399 = vadd.f32 %v1350, %v1398
  %v1400 = vpop.f32.mrb[0].mxu0
  %v1401 = vpop.f32.mrb[0].mxu0
  %v1402 = vadd.f32 %v1353, %v1401
  %v1403 = vpop.f32.mrb[0].mxu0
  %1404 = vdwg.mxu0
  %1405 = vmatprep.subr.bf16.mxu0 0
  %1406 = vmatpush1.bf16.msra.mxu0 %v1211
  %1407 = vmatprep.subr.bf16.mxu0 0
  %1408 = vmatpush1.bf16.msra.mxu0 %v1212
  %1409 = vmatprep.subr.bf16.mxu0 0
  %1410 = vmatpush1.bf16.msra.mxu0 %v1213
  %1411 = vmatprep.subr.bf16.mxu0 0
  %1412 = vmatpush1.bf16.msra.mxu0 %v1214
  %1413 = vmatprep.subr.bf16.mxu0 0
  %1414 = vmatpush1.bf16.msra.mxu0 %v1215
  %1415 = vmatprep.subr.bf16.mxu0 0
  %1416 = vmatpush1.bf16.msra.mxu0 %v1216
  %1417 = vmatprep.subr.bf16.mxu0 0
  %1418 = vmatpush1.bf16.msra.mxu0 %v1217
  %1419 = vmatprep.subr.bf16.mxu0 0
  %1420 = vmatpush1.bf16.msra.mxu0 %v1218
  %1421 = vmatprep.subr.bf16.mxu0 0
  %1422 = vmatpush1.bf16.msra.mxu0 %v1219
  %1423 = vmatprep.subr.bf16.mxu0 0
  %1424 = vmatpush1.bf16.msra.mxu0 %v1220
  %1425 = vmatprep.subr.bf16.mxu0 0
  %1426 = vmatpush1.bf16.msra.mxu0 %v1221
  %1427 = vmatprep.subr.bf16.mxu0 0
  %1428 = vmatpush1.bf16.msra.mxu0 %v1222
  %1429 = vmatprep.subr.bf16.mxu0 0
  %1430 = vmatpush1.bf16.msra.mxu0 %v1223
  %1431 = vmatprep.subr.bf16.mxu0 0
  %1432 = vmatpush1.bf16.msra.mxu0 %v1224
  %1433 = vmatprep.subr.bf16.mxu0 0
  %1434 = vmatpush1.bf16.msra.mxu0 %v1225
  %1435 = vmatprep.subr.bf16.mxu0 0
  %1436 = vmatpush1.bf16.msra.mxu0 %v1226
  %1437 = vmatprep.mubr.bf16.mxu0 %v777
  %1438 = vmatmul.mubr.bf16.gmra.mrb[0].mxu0 %v776
  %v1439 = vpop.f32.mrb[0].mxu0
  %v1440 = vadd.f32 %v1391, %v1439
  %v1441 = vpop.f32.mrb[0].mxu0
  %v1442 = vpop.f32.mrb[0].mxu0
  %v1443 = vadd.f32 %v1394, %v1442
  %v1444 = vpop.f32.mrb[0].mxu0
  %1445 = vmatprep.mubr.bf16.mxu0 %v785
  %1446 = vmatmul.mubr.bf16.gmra.mrb[0].mxu0 %v784
  %v1447 = vpop.f32.mrb[0].mxu0
  %v1448 = vadd.f32 %v1399, %v1447
  %v1449 = vpop.f32.mrb[0].mxu0
  %v1450 = vpop.f32.mrb[0].mxu0
  %v1451 = vadd.f32 %v1402, %v1450
  %v1452 = vpop.f32.mrb[0].mxu0
  %1453 = vdwg.mxu0
  %1454 = vmatprep.subr.bf16.mxu0 0
  %1455 = vmatpush1.bf16.msra.mxu0 %v1227
  %1456 = vmatprep.subr.bf16.mxu0 0
  %1457 = vmatpush1.bf16.msra.mxu0 %v1228
  %1458 = vmatprep.subr.bf16.mxu0 0
  %1459 = vmatpush1.bf16.msra.mxu0 %v1229
  %1460 = vmatprep.subr.bf16.mxu0 0
  %1461 = vmatpush1.bf16.msra.mxu0 %v1230
  %1462 = vmatprep.subr.bf16.mxu0 0
  %1463 = vmatpush1.bf16.msra.mxu0 %v1231
  %1464 = vmatprep.subr.bf16.mxu0 0
  %1465 = vmatpush1.bf16.msra.mxu0 %v1232
  %1466 = vmatprep.subr.bf16.mxu0 0
  %1467 = vmatpush1.bf16.msra.mxu0 %v1233
  %1468 = vmatprep.subr.bf16.mxu0 0
  %1469 = vmatpush1.bf16.msra.mxu0 %v1234
  %1470 = vmatprep.subr.bf16.mxu0 0
  %1471 = vmatpush1.bf16.msra.mxu0 %v1235
  %1472 = vmatprep.subr.bf16.mxu0 0
  %1473 = vmatpush1.bf16.msra.mxu0 %v1236
  %1474 = vmatprep.subr.bf16.mxu0 0
  %1475 = vmatpush1.bf16.msra.mxu0 %v1237
  %1476 = vmatprep.subr.bf16.mxu0 0
  %1477 = vmatpush1.bf16.msra.mxu0 %v1238
  %1478 = vmatprep.subr.bf16.mxu0 0
  %1479 = vmatpush1.bf16.msra.mxu0 %v1239
  %1480 = vmatprep.subr.bf16.mxu0 0
  %1481 = vmatpush1.bf16.msra.mxu0 %v1240
  %1482 = vmatprep.subr.bf16.mxu0 0
  %1483 = vmatpush1.bf16.msra.mxu0 %v1241
  %1484 = vmatprep.subr.bf16.mxu0 0
  %1485 = vmatpush1.bf16.msra.mxu0 %v1242
  %1486 = vmatprep.mubr.bf16.mxu0 %v779
  %1487 = vmatmul.mubr.bf16.gmra.mrb[0].mxu0 %v778
  %v1488 = vpop.f32.mrb[0].mxu0
  %v1489 = vadd.f32 %v1440, %v1488
  %v1490 = vpop.f32.mrb[0].mxu0
  %v1491 = vpop.f32.mrb[0].mxu0
  %v1492 = vadd.f32 %v1443, %v1491
  %v1493 = vpop.f32.mrb[0].mxu0
  %1494 = vmatprep.mubr.bf16.mxu0 %v787
  %1495 = vmatmul.mubr.bf16.gmra.mrb[0].mxu0 %v786
  %v1496 = vpop.f32.mrb[0].mxu0
  %v1497 = vadd.f32 %v1448, %v1496
  %v1498 = vpop.f32.mrb[0].mxu0
  %v1499 = vpop.f32.mrb[0].mxu0
  %v1500 = vadd.f32 %v1451, %v1499
  %v1501 = vpop.f32.mrb[0].mxu0
  %1502 = vdwg.mxu0
  %1503 = vst [vmem:[%s8] sm:$0xff] %v1489
  %1504 = vst [vmem:[%s8 + $0x8] sm:$0xff] %v1492
  %1505 = vst [vmem:[%s8 + $0x10] sm:$0xff] %v1497
  %1506 = vst [vmem:[%s8 + $0x18] sm:$0xff] %v1500
  // Predicated region
  $region34: #{all_body_forward.2} parent=0 // pred_check
    _
  $region35: #{all_body_forward.2} parent=0 // pred_check_branch
    %1508 = sbr.rel (0) target = $region37
  $region36: #{all_body_forward.2} parent=0 // pred_region
    _
  $region37: #{all_body_forward.2} parent=0 // pred_fallthru
    _
  // Predicated region
  $region38: #{all_body_forward.2} parent=0 // pred_check
    _
  $region39: #{all_body_forward.2} parent=0 // pred_check_branch
    %1510 = sbr.rel (0) target = $region41
  $region40: #{all_body_forward.2} parent=0 // pred_region
    _
  $region41: #{all_body_forward.2} parent=0 // pred_fallthru
    _

// kernel: all_body_forward.3
$region0: #{all_body_forward.3}
  #allocation0 [shape = 'u32[]', space=smem, size = 0x4, offset = 0x4, fixed_abs, tag = 'smem constant byte address 0x4 - core index']
  #allocation1 [shape = 'u32[144,128]{1,0:T(1,128)}', space=vmem, size = 0x12000, scoped, tag = 'internal scratch']
  %s0 = inlined_call_operand.vmem [shape: f32[10,4,4], index: 0, kind: input, shape index: {}]
  %s1 = inlined_call_operand.vmem [shape: f32[16,4], index: 1, kind: input, shape index: {}]
  %s2 = inlined_call_operand.vmem [shape: f32[4,16], index: 2, kind: input, shape index: {}]
  %s3 = inlined_call_operand.hbm [shape: f32[10,16,16], index: 3, kind: output, shape index: {}]
  %s4 = sld [smem:[#allocation0]]
  $region22: #{all_body_forward.3} parent=0
    _
  %s6 = ssub.s32 1, %s4
  %s7 = scalar_select 0, %s6, %s4
  $region1: #{all_body_forward.3} parent=0
    #allocation2 [shape = 'u8[81920]{0}', space=vmem, size = 0x14000, scoped, tag = 'output window, operand 0, single buffered']
    #allocation3 [shape = 's32[1]{0}', space=sflag, size = 0x4, scoped, tag = 'scoped memory for all_body_forward.3']
    %8 = vsyncpa [#allocation3], 0
    // Predicated region
    $region2: #{all_body_forward.3} parent=1 // pred_check
      _
    $region3: #{all_body_forward.3} parent=1 // pred_check_branch
      %10 = sbr.rel (0) target = $region5
    $region4: #{all_body_forward.3} parent=1 // pred_region
      _
    $region5: #{all_body_forward.3} parent=1 // pred_fallthru
      _
    // Predicated region
    $region6: #{all_body_forward.3} parent=1 // pred_check
      _
    $region7: #{all_body_forward.3} parent=1 // pred_check_branch
      %12 = sbr.rel (0) target = $region9
    $region8: #{all_body_forward.3} parent=1 // pred_region
      _
    $region9: #{all_body_forward.3} parent=1 // pred_fallthru
      _
    // Predicated region
    $region10: #{all_body_forward.3} parent=1 // pred_check
      _
    $region11: #{all_body_forward.3} parent=1 // pred_check_branch
      %14 = sbr.rel (0) target = $region13
    $region12: #{all_body_forward.3} parent=1 // pred_region
      _
    $region13: #{all_body_forward.3} parent=1 // pred_fallthru
      _
    %v15 = vld [vmem:[%s2] sm:$0xf]
    %v16 = vld [vmem:[%s1] sm:$0xff]
    %v17 = vld [vmem:[%s1 + $0x8] sm:$0xff]
    %v18 = vld [vmem:[%s0] sm:$0xf]
    %v19 = vld [vmem:[%s0 + $0x4] sm:$0xf]
    %v20 = vld [vmem:[%s0 + $0x8] sm:$0xf]
    %v21 = vld [vmem:[%s0 + $0xc] sm:$0xf]
    %v22 = vld [vmem:[%s0 + $0x10] sm:$0xf]
    %v23 = vld [vmem:[%s0 + $0x14] sm:$0xf]
    %v24 = vld [vmem:[%s0 + $0x18] sm:$0xf]
    %v25 = vld [vmem:[%s0 + $0x1c] sm:$0xf]
    %v26 = vld [vmem:[%s0 + $0x20] sm:$0xf]
    %v27 = vld [vmem:[%s0 + $0x24] sm:$0xf]
    %vm28 = vcmask 31744
    %v30 = vsel %vm28, %v18, 0
    %vm32 = vcmask 1043456
    %v34 = vsel %vm32, %v15, 0
    %36 = vmatprep.subr.mxu0 0.0
    %37 = vmatpush1.msra.mxu0 %v34
    %38 = vmatprep.subr.mxu0 0.0
    %39 = vmatpush1.msra.mxu0 0.0
    %40 = vmatprep.subr.mxu0 0.0
    %41 = vmatpush1.msra.mxu0 0.0
    %42 = vmatprep.subr.mxu0 0.0
    %43 = vmatpush1.msra.mxu0 0.0
    %44 = vmatprep.subr.mxu0 0.0
    %45 = vmatpush1.msra.mxu0 0.0
    %46 = vmatprep.subr.mxu0 0.0
    %47 = vmatpush1.msra.mxu0 0.0
    %48 = vmatprep.subr.mxu0 0.0
    %49 = vmatpush1.msra.mxu0 0.0
    %50 = vmatprep.subr.mxu0 0.0
    %51 = vmatpush1.msra.mxu0 0.0
    %52 = vmatprep.subr.mxu0 0.0
    %53 = vmatpush1.msra.mxu0 0.0
    %54 = vmatprep.subr.mxu0 0.0
    %55 = vmatpush1.msra.mxu0 0.0
    %56 = vmatprep.subr.mxu0 0.0
    %57 = vmatpush1.msra.mxu0 0.0
    %58 = vmatprep.subr.mxu0 0.0
    %59 = vmatpush1.msra.mxu0 0.0
    %60 = vmatprep.subr.mxu0 0.0
    %61 = vmatpush1.msra.mxu0 0.0
    %62 = vmatprep.subr.mxu0 0.0
    %63 = vmatpush1.msra.mxu0 0.0
    %64 = vmatprep.subr.mxu0 0.0
    %65 = vmatpush1.msra.mxu0 0.0
    %66 = vmatprep.subr.mxu0 0.0
    %67 = vmatpush1.msra.mxu0 0.0
    %68 = vmatprep.subr.mxu0 0.0
    %69 = vmatpush1.msra.mxu0 0.0
    %70 = vmatprep.subr.mxu0 0.0
    %71 = vmatpush1.msra.mxu0 0.0
    %72 = vmatprep.subr.mxu0 0.0
    %73 = vmatpush1.msra.mxu0 0.0
    %74 = vmatprep.subr.mxu0 0.0
    %75 = vmatpush1.msra.mxu0 0.0
    %76 = vmatprep.subr.mxu0 0.0
    %77 = vmatpush1.msra.mxu0 0.0
    %78 = vmatprep.subr.mxu0 0.0
    %79 = vmatpush1.msra.mxu0 0.0
    %80 = vmatprep.subr.mxu0 0.0
    %81 = vmatpush1.msra.mxu0 0.0
    %82 = vmatprep.subr.mxu0 0.0
    %83 = vmatpush1.msra.mxu0 0.0
    %84 = vmatprep.subr.mxu0 0.0
    %85 = vmatpush1.msra.mxu0 0.0
    %86 = vmatprep.subr.mxu0 0.0
    %87 = vmatpush1.msra.mxu0 0.0
    %88 = vmatprep.subr.mxu0 0.0
    %89 = vmatpush1.msra.mxu0 0.0
    %90 = vmatprep.subr.mxu0 0.0
    %91 = vmatpush1.msra.mxu0 0.0
    %92 = vmatprep.subr.mxu0 0.0
    %93 = vmatpush1.msra.mxu0 0.0
    %94 = vmatprep.subr.mxu0 0.0
    %95 = vmatpush1.msra.mxu0 0.0
    %96 = vmatprep.subr.mxu0 0.0
    %97 = vmatpush1.msra.mxu0 0.0
    %98 = vmatprep.subr.mxu0 0.0
    %99 = vmatpush1.msra.mxu0 0.0
    %100 = vmatprep.mubr.f32.mxu0 0.0
    %101 = vmatmul.mubr.f32.gmra.mrb[0].mxu0 %v30
    %v102 = vpop.f32.mrb[0].mxu0
    %v103 = vadd.f32 0.0, %v102
    %v104 = vpop.f32.mrb[0].mxu0
    %105 = vdwg.mxu0
    %v107 = vsel %vm28, %v19, 0
    %109 = vmatprep.subr.mxu0 0.0
    %110 = vmatpush1.msra.mxu0 %v34
    %111 = vmatprep.subr.mxu0 0.0
    %112 = vmatpush1.msra.mxu0 0.0
    %113 = vmatprep.subr.mxu0 0.0
    %114 = vmatpush1.msra.mxu0 0.0
    %115 = vmatprep.subr.mxu0 0.0
    %116 = vmatpush1.msra.mxu0 0.0
    %117 = vmatprep.subr.mxu0 0.0
    %118 = vmatpush1.msra.mxu0 0.0
    %119 = vmatprep.subr.mxu0 0.0
    %120 = vmatpush1.msra.mxu0 0.0
    %121 = vmatprep.subr.mxu0 0.0
    %122 = vmatpush1.msra.mxu0 0.0
    %123 = vmatprep.subr.mxu0 0.0
    %124 = vmatpush1.msra.mxu0 0.0
    %125 = vmatprep.subr.mxu0 0.0
    %126 = vmatpush1.msra.mxu0 0.0
    %127 = vmatprep.subr.mxu0 0.0
    %128 = vmatpush1.msra.mxu0 0.0
    %129 = vmatprep.subr.mxu0 0.0
    %130 = vmatpush1.msra.mxu0 0.0
    %131 = vmatprep.subr.mxu0 0.0
    %132 = vmatpush1.msra.mxu0 0.0
    %133 = vmatprep.subr.mxu0 0.0
    %134 = vmatpush1.msra.mxu0 0.0
    %135 = vmatprep.subr.mxu0 0.0
    %136 = vmatpush1.msra.mxu0 0.0
    %137 = vmatprep.subr.mxu0 0.0
    %138 = vmatpush1.msra.mxu0 0.0
    %139 = vmatprep.subr.mxu0 0.0
    %140 = vmatpush1.msra.mxu0 0.0
    %141 = vmatprep.subr.mxu0 0.0
    %142 = vmatpush1.msra.mxu0 0.0
    %143 = vmatprep.subr.mxu0 0.0
    %144 = vmatpush1.msra.mxu0 0.0
    %145 = vmatprep.subr.mxu0 0.0
    %146 = vmatpush1.msra.mxu0 0.0
    %147 = vmatprep.subr.mxu0 0.0
    %148 = vmatpush1.msra.mxu0 0.0
    %149 = vmatprep.subr.mxu0 0.0
    %150 = vmatpush1.msra.mxu0 0.0
    %151 = vmatprep.subr.mxu0 0.0
    %152 = vmatpush1.msra.mxu0 0.0
    %153 = vmatprep.subr.mxu0 0.0
    %154 = vmatpush1.msra.mxu0 0.0
    %155 = vmatprep.subr.mxu0 0.0
    %156 = vmatpush1.msra.mxu0 0.0
    %157 = vmatprep.subr.mxu0 0.0
    %158 = vmatpush1.msra.mxu0 0.0
    %159 = vmatprep.subr.mxu0 0.0
    %160 = vmatpush1.msra.mxu0 0.0
    %161 = vmatprep.subr.mxu0 0.0
    %162 = vmatpush1.msra.mxu0 0.0
    %163 = vmatprep.subr.mxu0 0.0
    %164 = vmatpush1.msra.mxu0 0.0
    %165 = vmatprep.subr.mxu0 0.0
    %166 = vmatpush1.msra.mxu0 0.0
    %167 = vmatprep.subr.mxu0 0.0
    %168 = vmatpush1.msra.mxu0 0.0
    %169 = vmatprep.subr.mxu0 0.0
    %170 = vmatpush1.msra.mxu0 0.0
    %171 = vmatprep.subr.mxu0 0.0
    %172 = vmatpush1.msra.mxu0 0.0
    %173 = vmatprep.mubr.f32.mxu0 0.0
    %174 = vmatmul.mubr.f32.gmra.mrb[0].mxu0 %v107
    %v175 = vpop.f32.mrb[0].mxu0
    %v176 = vadd.f32 0.0, %v175
    %v177 = vpop.f32.mrb[0].mxu0
    %178 = vdwg.mxu0
    %v180 = vsel %vm28, %v20, 0
    %182 = vmatprep.subr.mxu0 0.0
    %183 = vmatpush1.msra.mxu0 %v34
    %184 = vmatprep.subr.mxu0 0.0
    %185 = vmatpush1.msra.mxu0 0.0
    %186 = vmatprep.subr.mxu0 0.0
    %187 = vmatpush1.msra.mxu0 0.0
    %188 = vmatprep.subr.mxu0 0.0
    %189 = vmatpush1.msra.mxu0 0.0
    %190 = vmatprep.subr.mxu0 0.0
    %191 = vmatpush1.msra.mxu0 0.0
    %192 = vmatprep.subr.mxu0 0.0
    %193 = vmatpush1.msra.mxu0 0.0
    %194 = vmatprep.subr.mxu0 0.0
    %195 = vmatpush1.msra.mxu0 0.0
    %196 = vmatprep.subr.mxu0 0.0
    %197 = vmatpush1.msra.mxu0 0.0
    %198 = vmatprep.subr.mxu0 0.0
    %199 = vmatpush1.msra.mxu0 0.0
    %200 = vmatprep.subr.mxu0 0.0
    %201 = vmatpush1.msra.mxu0 0.0
    %202 = vmatprep.subr.mxu0 0.0
    %203 = vmatpush1.msra.mxu0 0.0
    %204 = vmatprep.subr.mxu0 0.0
    %205 = vmatpush1.msra.mxu0 0.0
    %206 = vmatprep.subr.mxu0 0.0
    %207 = vmatpush1.msra.mxu0 0.0
    %208 = vmatprep.subr.mxu0 0.0
    %209 = vmatpush1.msra.mxu0 0.0
    %210 = vmatprep.subr.mxu0 0.0
    %211 = vmatpush1.msra.mxu0 0.0
    %212 = vmatprep.subr.mxu0 0.0
    %213 = vmatpush1.msra.mxu0 0.0
    %214 = vmatprep.subr.mxu0 0.0
    %215 = vmatpush1.msra.mxu0 0.0
    %216 = vmatprep.subr.mxu0 0.0
    %217 = vmatpush1.msra.mxu0 0.0
    %218 = vmatprep.subr.mxu0 0.0
    %219 = vmatpush1.msra.mxu0 0.0
    %220 = vmatprep.subr.mxu0 0.0
    %221 = vmatpush1.msra.mxu0 0.0
    %222 = vmatprep.subr.mxu0 0.0
    %223 = vmatpush1.msra.mxu0 0.0
    %224 = vmatprep.subr.mxu0 0.0
    %225 = vmatpush1.msra.mxu0 0.0
    %226 = vmatprep.subr.mxu0 0.0
    %227 = vmatpush1.msra.mxu0 0.0
    %228 = vmatprep.subr.mxu0 0.0
    %229 = vmatpush1.msra.mxu0 0.0
    %230 = vmatprep.subr.mxu0 0.0
    %231 = vmatpush1.msra.mxu0 0.0
    %232 = vmatprep.subr.mxu0 0.0
    %233 = vmatpush1.msra.mxu0 0.0
    %234 = vmatprep.subr.mxu0 0.0
    %235 = vmatpush1.msra.mxu0 0.0
    %236 = vmatprep.subr.mxu0 0.0
    %237 = vmatpush1.msra.mxu0 0.0
    %238 = vmatprep.subr.mxu0 0.0
    %239 = vmatpush1.msra.mxu0 0.0
    %240 = vmatprep.subr.mxu0 0.0
    %241 = vmatpush1.msra.mxu0 0.0
    %242 = vmatprep.subr.mxu0 0.0
    %243 = vmatpush1.msra.mxu0 0.0
    %244 = vmatprep.subr.mxu0 0.0
    %245 = vmatpush1.msra.mxu0 0.0
    %246 = vmatprep.mubr.f32.mxu0 0.0
    %247 = vmatmul.mubr.f32.gmra.mrb[0].mxu0 %v180
    %v248 = vpop.f32.mrb[0].mxu0
    %v249 = vadd.f32 0.0, %v248
    %v250 = vpop.f32.mrb[0].mxu0
    %251 = vdwg.mxu0
    %v253 = vsel %vm28, %v21, 0
    %255 = vmatprep.subr.mxu0 0.0
    %256 = vmatpush1.msra.mxu0 %v34
    %257 = vmatprep.subr.mxu0 0.0
    %258 = vmatpush1.msra.mxu0 0.0
    %259 = vmatprep.subr.mxu0 0.0
    %260 = vmatpush1.msra.mxu0 0.0
    %261 = vmatprep.subr.mxu0 0.0
    %262 = vmatpush1.msra.mxu0 0.0
    %263 = vmatprep.subr.mxu0 0.0
    %264 = vmatpush1.msra.mxu0 0.0
    %265 = vmatprep.subr.mxu0 0.0
    %266 = vmatpush1.msra.mxu0 0.0
    %267 = vmatprep.subr.mxu0 0.0
    %268 = vmatpush1.msra.mxu0 0.0
    %269 = vmatprep.subr.mxu0 0.0
    %270 = vmatpush1.msra.mxu0 0.0
    %271 = vmatprep.subr.mxu0 0.0
    %272 = vmatpush1.msra.mxu0 0.0
    %273 = vmatprep.subr.mxu0 0.0
    %274 = vmatpush1.msra.mxu0 0.0
    %275 = vmatprep.subr.mxu0 0.0
    %276 = vmatpush1.msra.mxu0 0.0
    %277 = vmatprep.subr.mxu0 0.0
    %278 = vmatpush1.msra.mxu0 0.0
    %279 = vmatprep.subr.mxu0 0.0
    %280 = vmatpush1.msra.mxu0 0.0
    %281 = vmatprep.subr.mxu0 0.0
    %282 = vmatpush1.msra.mxu0 0.0
    %283 = vmatprep.subr.mxu0 0.0
    %284 = vmatpush1.msra.mxu0 0.0
    %285 = vmatprep.subr.mxu0 0.0
    %286 = vmatpush1.msra.mxu0 0.0
    %287 = vmatprep.subr.mxu0 0.0
    %288 = vmatpush1.msra.mxu0 0.0
    %289 = vmatprep.subr.mxu0 0.0
    %290 = vmatpush1.msra.mxu0 0.0
    %291 = vmatprep.subr.mxu0 0.0
    %292 = vmatpush1.msra.mxu0 0.0
    %293 = vmatprep.subr.mxu0 0.0
    %294 = vmatpush1.msra.mxu0 0.0
    %295 = vmatprep.subr.mxu0 0.0
    %296 = vmatpush1.msra.mxu0 0.0
    %297 = vmatprep.subr.mxu0 0.0
    %298 = vmatpush1.msra.mxu0 0.0
    %299 = vmatprep.subr.mxu0 0.0
    %300 = vmatpush1.msra.mxu0 0.0
    %301 = vmatprep.subr.mxu0 0.0
    %302 = vmatpush1.msra.mxu0 0.0
    %303 = vmatprep.subr.mxu0 0.0
    %304 = vmatpush1.msra.mxu0 0.0
    %305 = vmatprep.subr.mxu0 0.0
    %306 = vmatpush1.msra.mxu0 0.0
    %307 = vmatprep.subr.mxu0 0.0
    %308 = vmatpush1.msra.mxu0 0.0
    %309 = vmatprep.subr.mxu0 0.0
    %310 = vmatpush1.msra.mxu0 0.0
    %311 = vmatprep.subr.mxu0 0.0
    %312 = vmatpush1.msra.mxu0 0.0
    %313 = vmatprep.subr.mxu0 0.0
    %314 = vmatpush1.msra.mxu0 0.0
    %315 = vmatprep.subr.mxu0 0.0
    %316 = vmatpush1.msra.mxu0 0.0
    %317 = vmatprep.subr.mxu0 0.0
    %318 = vmatpush1.msra.mxu0 0.0
    %319 = vmatprep.mubr.f32.mxu0 0.0
    %320 = vmatmul.mubr.f32.gmra.mrb[0].mxu0 %v253
    %v321 = vpop.f32.mrb[0].mxu0
    %v322 = vadd.f32 0.0, %v321
    %v323 = vpop.f32.mrb[0].mxu0
    %324 = vdwg.mxu0
    %v326 = vsel %vm28, %v22, 0
    %328 = vmatprep.subr.mxu0 0.0
    %329 = vmatpush1.msra.mxu0 %v34
    %330 = vmatprep.subr.mxu0 0.0
    %331 = vmatpush1.msra.mxu0 0.0
    %332 = vmatprep.subr.mxu0 0.0
    %333 = vmatpush1.msra.mxu0 0.0
    %334 = vmatprep.subr.mxu0 0.0
    %335 = vmatpush1.msra.mxu0 0.0
    %336 = vmatprep.subr.mxu0 0.0
    %337 = vmatpush1.msra.mxu0 0.0
    %338 = vmatprep.subr.mxu0 0.0
    %339 = vmatpush1.msra.mxu0 0.0
    %340 = vmatprep.subr.mxu0 0.0
    %341 = vmatpush1.msra.mxu0 0.0
    %342 = vmatprep.subr.mxu0 0.0
    %343 = vmatpush1.msra.mxu0 0.0
    %344 = vmatprep.subr.mxu0 0.0
    %345 = vmatpush1.msra.mxu0 0.0
    %346 = vmatprep.subr.mxu0 0.0
    %347 = vmatpush1.msra.mxu0 0.0
    %348 = vmatprep.subr.mxu0 0.0
    %349 = vmatpush1.msra.mxu0 0.0
    %350 = vmatprep.subr.mxu0 0.0
    %351 = vmatpush1.msra.mxu0 0.0
    %352 = vmatprep.subr.mxu0 0.0
    %353 = vmatpush1.msra.mxu0 0.0
    %354 = vmatprep.subr.mxu0 0.0
    %355 = vmatpush1.msra.mxu0 0.0
    %356 = vmatprep.subr.mxu0 0.0
    %357 = vmatpush1.msra.mxu0 0.0
    %358 = vmatprep.subr.mxu0 0.0
    %359 = vmatpush1.msra.mxu0 0.0
    %360 = vmatprep.subr.mxu0 0.0
    %361 = vmatpush1.msra.mxu0 0.0
    %362 = vmatprep.subr.mxu0 0.0
    %363 = vmatpush1.msra.mxu0 0.0
    %364 = vmatprep.subr.mxu0 0.0
    %365 = vmatpush1.msra.mxu0 0.0
    %366 = vmatprep.subr.mxu0 0.0
    %367 = vmatpush1.msra.mxu0 0.0
    %368 = vmatprep.subr.mxu0 0.0
    %369 = vmatpush1.msra.mxu0 0.0
    %370 = vmatprep.subr.mxu0 0.0
    %371 = vmatpush1.msra.mxu0 0.0
    %372 = vmatprep.subr.mxu0 0.0
    %373 = vmatpush1.msra.mxu0 0.0
    %374 = vmatprep.subr.mxu0 0.0
    %375 = vmatpush1.msra.mxu0 0.0
    %376 = vmatprep.subr.mxu0 0.0
    %377 = vmatpush1.msra.mxu0 0.0
    %378 = vmatprep.subr.mxu0 0.0
    %379 = vmatpush1.msra.mxu0 0.0
    %380 = vmatprep.subr.mxu0 0.0
    %381 = vmatpush1.msra.mxu0 0.0
    %382 = vmatprep.subr.mxu0 0.0
    %383 = vmatpush1.msra.mxu0 0.0
    %384 = vmatprep.subr.mxu0 0.0
    %385 = vmatpush1.msra.mxu0 0.0
    %386 = vmatprep.subr.mxu0 0.0
    %387 = vmatpush1.msra.mxu0 0.0
    %388 = vmatprep.subr.mxu0 0.0
    %389 = vmatpush1.msra.mxu0 0.0
    %390 = vmatprep.subr.mxu0 0.0
    %391 = vmatpush1.msra.mxu0 0.0
    %392 = vmatprep.mubr.f32.mxu0 0.0
    %393 = vmatmul.mubr.f32.gmra.mrb[0].mxu0 %v326
    %v394 = vpop.f32.mrb[0].mxu0
    %v395 = vadd.f32 0.0, %v394
    %v396 = vpop.f32.mrb[0].mxu0
    %397 = vdwg.mxu0
    %v399 = vsel %vm28, %v23, 0
    %401 = vmatprep.subr.mxu0 0.0
    %402 = vmatpush1.msra.mxu0 %v34
    %403 = vmatprep.subr.mxu0 0.0
    %404 = vmatpush1.msra.mxu0 0.0
    %405 = vmatprep.subr.mxu0 0.0
    %406 = vmatpush1.msra.mxu0 0.0
    %407 = vmatprep.subr.mxu0 0.0
    %408 = vmatpush1.msra.mxu0 0.0
    %409 = vmatprep.subr.mxu0 0.0
    %410 = vmatpush1.msra.mxu0 0.0
    %411 = vmatprep.subr.mxu0 0.0
    %412 = vmatpush1.msra.mxu0 0.0
    %413 = vmatprep.subr.mxu0 0.0
    %414 = vmatpush1.msra.mxu0 0.0
    %415 = vmatprep.subr.mxu0 0.0
    %416 = vmatpush1.msra.mxu0 0.0
    %417 = vmatprep.subr.mxu0 0.0
    %418 = vmatpush1.msra.mxu0 0.0
    %419 = vmatprep.subr.mxu0 0.0
    %420 = vmatpush1.msra.mxu0 0.0
    %421 = vmatprep.subr.mxu0 0.0
    %422 = vmatpush1.msra.mxu0 0.0
    %423 = vmatprep.subr.mxu0 0.0
    %424 = vmatpush1.msra.mxu0 0.0
    %425 = vmatprep.subr.mxu0 0.0
    %426 = vmatpush1.msra.mxu0 0.0
    %427 = vmatprep.subr.mxu0 0.0
    %428 = vmatpush1.msra.mxu0 0.0
    %429 = vmatprep.subr.mxu0 0.0
    %430 = vmatpush1.msra.mxu0 0.0
    %431 = vmatprep.subr.mxu0 0.0
    %432 = vmatpush1.msra.mxu0 0.0
    %433 = vmatprep.subr.mxu0 0.0
    %434 = vmatpush1.msra.mxu0 0.0
    %435 = vmatprep.subr.mxu0 0.0
    %436 = vmatpush1.msra.mxu0 0.0
    %437 = vmatprep.subr.mxu0 0.0
    %438 = vmatpush1.msra.mxu0 0.0
    %439 = vmatprep.subr.mxu0 0.0
    %440 = vmatpush1.msra.mxu0 0.0
    %441 = vmatprep.subr.mxu0 0.0
    %442 = vmatpush1.msra.mxu0 0.0
    %443 = vmatprep.subr.mxu0 0.0
    %444 = vmatpush1.msra.mxu0 0.0
    %445 = vmatprep.subr.mxu0 0.0
    %446 = vmatpush1.msra.mxu0 0.0
    %447 = vmatprep.subr.mxu0 0.0
    %448 = vmatpush1.msra.mxu0 0.0
    %449 = vmatprep.subr.mxu0 0.0
    %450 = vmatpush1.msra.mxu0 0.0
    %451 = vmatprep.subr.mxu0 0.0
    %452 = vmatpush1.msra.mxu0 0.0
    %453 = vmatprep.subr.mxu0 0.0
    %454 = vmatpush1.msra.mxu0 0.0
    %455 = vmatprep.subr.mxu0 0.0
    %456 = vmatpush1.msra.mxu0 0.0
    %457 = vmatprep.subr.mxu0 0.0
    %458 = vmatpush1.msra.mxu0 0.0
    %459 = vmatprep.subr.mxu0 0.0
    %460 = vmatpush1.msra.mxu0 0.0
    %461 = vmatprep.subr.mxu0 0.0
    %462 = vmatpush1.msra.mxu0 0.0
    %463 = vmatprep.subr.mxu0 0.0
    %464 = vmatpush1.msra.mxu0 0.0
    %465 = vmatprep.mubr.f32.mxu0 0.0
    %466 = vmatmul.mubr.f32.gmra.mrb[0].mxu0 %v399
    %v467 = vpop.f32.mrb[0].mxu0
    %v468 = vadd.f32 0.0, %v467
    %v469 = vpop.f32.mrb[0].mxu0
    %470 = vdwg.mxu0
    %v472 = vsel %vm28, %v24, 0
    %474 = vmatprep.subr.mxu0 0.0
    %475 = vmatpush1.msra.mxu0 %v34
    %476 = vmatprep.subr.mxu0 0.0
    %477 = vmatpush1.msra.mxu0 0.0
    %478 = vmatprep.subr.mxu0 0.0
    %479 = vmatpush1.msra.mxu0 0.0
    %480 = vmatprep.subr.mxu0 0.0
    %481 = vmatpush1.msra.mxu0 0.0
    %482 = vmatprep.subr.mxu0 0.0
    %483 = vmatpush1.msra.mxu0 0.0
    %484 = vmatprep.subr.mxu0 0.0
    %485 = vmatpush1.msra.mxu0 0.0
    %486 = vmatprep.subr.mxu0 0.0
    %487 = vmatpush1.msra.mxu0 0.0
    %488 = vmatprep.subr.mxu0 0.0
    %489 = vmatpush1.msra.mxu0 0.0
    %490 = vmatprep.subr.mxu0 0.0
    %491 = vmatpush1.msra.mxu0 0.0
    %492 = vmatprep.subr.mxu0 0.0
    %493 = vmatpush1.msra.mxu0 0.0
    %494 = vmatprep.subr.mxu0 0.0
    %495 = vmatpush1.msra.mxu0 0.0
    %496 = vmatprep.subr.mxu0 0.0
    %497 = vmatpush1.msra.mxu0 0.0
    %498 = vmatprep.subr.mxu0 0.0
    %499 = vmatpush1.msra.mxu0 0.0
    %500 = vmatprep.subr.mxu0 0.0
    %501 = vmatpush1.msra.mxu0 0.0
    %502 = vmatprep.subr.mxu0 0.0
    %503 = vmatpush1.msra.mxu0 0.0
    %504 = vmatprep.subr.mxu0 0.0
    %505 = vmatpush1.msra.mxu0 0.0
    %506 = vmatprep.subr.mxu0 0.0
    %507 = vmatpush1.msra.mxu0 0.0
    %508 = vmatprep.subr.mxu0 0.0
    %509 = vmatpush1.msra.mxu0 0.0
    %510 = vmatprep.subr.mxu0 0.0
    %511 = vmatpush1.msra.mxu0 0.0
    %512 = vmatprep.subr.mxu0 0.0
    %513 = vmatpush1.msra.mxu0 0.0
    %514 = vmatprep.subr.mxu0 0.0
    %515 = vmatpush1.msra.mxu0 0.0
    %516 = vmatprep.subr.mxu0 0.0
    %517 = vmatpush1.msra.mxu0 0.0
    %518 = vmatprep.subr.mxu0 0.0
    %519 = vmatpush1.msra.mxu0 0.0
    %520 = vmatprep.subr.mxu0 0.0
    %521 = vmatpush1.msra.mxu0 0.0
    %522 = vmatprep.subr.mxu0 0.0
    %523 = vmatpush1.msra.mxu0 0.0
    %524 = vmatprep.subr.mxu0 0.0
    %525 = vmatpush1.msra.mxu0 0.0
    %526 = vmatprep.subr.mxu0 0.0
    %527 = vmatpush1.msra.mxu0 0.0
    %528 = vmatprep.subr.mxu0 0.0
    %529 = vmatpush1.msra.mxu0 0.0
    %530 = vmatprep.subr.mxu0 0.0
    %531 = vmatpush1.msra.mxu0 0.0
    %532 = vmatprep.subr.mxu0 0.0
    %533 = vmatpush1.msra.mxu0 0.0
    %534 = vmatprep.subr.mxu0 0.0
    %535 = vmatpush1.msra.mxu0 0.0
    %536 = vmatprep.subr.mxu0 0.0
    %537 = vmatpush1.msra.mxu0 0.0
    %538 = vmatprep.mubr.f32.mxu0 0.0
    %539 = vmatmul.mubr.f32.gmra.mrb[0].mxu0 %v472
    %v540 = vpop.f32.mrb[0].mxu0
    %v541 = vadd.f32 0.0, %v540
    %v542 = vpop.f32.mrb[0].mxu0
    %543 = vdwg.mxu0
    %v545 = vsel %vm28, %v25, 0
    %547 = vmatprep.subr.mxu0 0.0
    %548 = vmatpush1.msra.mxu0 %v34
    %549 = vmatprep.subr.mxu0 0.0
    %550 = vmatpush1.msra.mxu0 0.0
    %551 = vmatprep.subr.mxu0 0.0
    %552 = vmatpush1.msra.mxu0 0.0
    %553 = vmatprep.subr.mxu0 0.0
    %554 = vmatpush1.msra.mxu0 0.0
    %555 = vmatprep.subr.mxu0 0.0
    %556 = vmatpush1.msra.mxu0 0.0
    %557 = vmatprep.subr.mxu0 0.0
    %558 = vmatpush1.msra.mxu0 0.0
    %559 = vmatprep.subr.mxu0 0.0
    %560 = vmatpush1.msra.mxu0 0.0
    %561 = vmatprep.subr.mxu0 0.0
    %562 = vmatpush1.msra.mxu0 0.0
    %563 = vmatprep.subr.mxu0 0.0
    %564 = vmatpush1.msra.mxu0 0.0
    %565 = vmatprep.subr.mxu0 0.0
    %566 = vmatpush1.msra.mxu0 0.0
    %567 = vmatprep.subr.mxu0 0.0
    %568 = vmatpush1.msra.mxu0 0.0
    %569 = vmatprep.subr.mxu0 0.0
    %570 = vmatpush1.msra.mxu0 0.0
    %571 = vmatprep.subr.mxu0 0.0
    %572 = vmatpush1.msra.mxu0 0.0
    %573 = vmatprep.subr.mxu0 0.0
    %574 = vmatpush1.msra.mxu0 0.0
    %575 = vmatprep.subr.mxu0 0.0
    %576 = vmatpush1.msra.mxu0 0.0
    %577 = vmatprep.subr.mxu0 0.0
    %578 = vmatpush1.msra.mxu0 0.0
    %579 = vmatprep.subr.mxu0 0.0
    %580 = vmatpush1.msra.mxu0 0.0
    %581 = vmatprep.subr.mxu0 0.0
    %582 = vmatpush1.msra.mxu0 0.0
    %583 = vmatprep.subr.mxu0 0.0
    %584 = vmatpush1.msra.mxu0 0.0
    %585 = vmatprep.subr.mxu0 0.0
    %586 = vmatpush1.msra.mxu0 0.0
    %587 = vmatprep.subr.mxu0 0.0
    %588 = vmatpush1.msra.mxu0 0.0
    %589 = vmatprep.subr.mxu0 0.0
    %590 = vmatpush1.msra.mxu0 0.0
    %591 = vmatprep.subr.mxu0 0.0
    %592 = vmatpush1.msra.mxu0 0.0
    %593 = vmatprep.subr.mxu0 0.0
    %594 = vmatpush1.msra.mxu0 0.0
    %595 = vmatprep.subr.mxu0 0.0
    %596 = vmatpush1.msra.mxu0 0.0
    %597 = vmatprep.subr.mxu0 0.0
    %598 = vmatpush1.msra.mxu0 0.0
    %599 = vmatprep.subr.mxu0 0.0
    %600 = vmatpush1.msra.mxu0 0.0
    %601 = vmatprep.subr.mxu0 0.0
    %602 = vmatpush1.msra.mxu0 0.0
    %603 = vmatprep.subr.mxu0 0.0
    %604 = vmatpush1.msra.mxu0 0.0
    %605 = vmatprep.subr.mxu0 0.0
    %606 = vmatpush1.msra.mxu0 0.0
    %607 = vmatprep.subr.mxu0 0.0
    %608 = vmatpush1.msra.mxu0 0.0
    %609 = vmatprep.subr.mxu0 0.0
    %610 = vmatpush1.msra.mxu0 0.0
    %611 = vmatprep.mubr.f32.mxu0 0.0
    %612 = vmatmul.mubr.f32.gmra.mrb[0].mxu0 %v545
    %v613 = vpop.f32.mrb[0].mxu0
    %v614 = vadd.f32 0.0, %v613
    %v615 = vpop.f32.mrb[0].mxu0
    %616 = vdwg.mxu0
    %v618 = vsel %vm28, %v26, 0
    %620 = vmatprep.subr.mxu0 0.0
    %621 = vmatpush1.msra.mxu0 %v34
    %622 = vmatprep.subr.mxu0 0.0
    %623 = vmatpush1.msra.mxu0 0.0
    %624 = vmatprep.subr.mxu0 0.0
    %625 = vmatpush1.msra.mxu0 0.0
    %626 = vmatprep.subr.mxu0 0.0
    %627 = vmatpush1.msra.mxu0 0.0
    %628 = vmatprep.subr.mxu0 0.0
    %629 = vmatpush1.msra.mxu0 0.0
    %630 = vmatprep.subr.mxu0 0.0
    %631 = vmatpush1.msra.mxu0 0.0
    %632 = vmatprep.subr.mxu0 0.0
    %633 = vmatpush1.msra.mxu0 0.0
    %634 = vmatprep.subr.mxu0 0.0
    %635 = vmatpush1.msra.mxu0 0.0
    %636 = vmatprep.subr.mxu0 0.0
    %637 = vmatpush1.msra.mxu0 0.0
    %638 = vmatprep.subr.mxu0 0.0
    %639 = vmatpush1.msra.mxu0 0.0
    %640 = vmatprep.subr.mxu0 0.0
    %641 = vmatpush1.msra.mxu0 0.0
    %642 = vmatprep.subr.mxu0 0.0
    %643 = vmatpush1.msra.mxu0 0.0
    %644 = vmatprep.subr.mxu0 0.0
    %645 = vmatpush1.msra.mxu0 0.0
    %646 = vmatprep.subr.mxu0 0.0
    %647 = vmatpush1.msra.mxu0 0.0
    %648 = vmatprep.subr.mxu0 0.0
    %649 = vmatpush1.msra.mxu0 0.0
    %650 = vmatprep.subr.mxu0 0.0
    %651 = vmatpush1.msra.mxu0 0.0
    %652 = vmatprep.subr.mxu0 0.0
    %653 = vmatpush1.msra.mxu0 0.0
    %654 = vmatprep.subr.mxu0 0.0
    %655 = vmatpush1.msra.mxu0 0.0
    %656 = vmatprep.subr.mxu0 0.0
    %657 = vmatpush1.msra.mxu0 0.0
    %658 = vmatprep.subr.mxu0 0.0
    %659 = vmatpush1.msra.mxu0 0.0
    %660 = vmatprep.subr.mxu0 0.0
    %661 = vmatpush1.msra.mxu0 0.0
    %662 = vmatprep.subr.mxu0 0.0
    %663 = vmatpush1.msra.mxu0 0.0
    %664 = vmatprep.subr.mxu0 0.0
    %665 = vmatpush1.msra.mxu0 0.0
    %666 = vmatprep.subr.mxu0 0.0
    %667 = vmatpush1.msra.mxu0 0.0
    %668 = vmatprep.subr.mxu0 0.0
    %669 = vmatpush1.msra.mxu0 0.0
    %670 = vmatprep.subr.mxu0 0.0
    %671 = vmatpush1.msra.mxu0 0.0
    %672 = vmatprep.subr.mxu0 0.0
    %673 = vmatpush1.msra.mxu0 0.0
    %674 = vmatprep.subr.mxu0 0.0
    %675 = vmatpush1.msra.mxu0 0.0
    %676 = vmatprep.subr.mxu0 0.0
    %677 = vmatpush1.msra.mxu0 0.0
    %678 = vmatprep.subr.mxu0 0.0
    %679 = vmatpush1.msra.mxu0 0.0
    %680 = vmatprep.subr.mxu0 0.0
    %681 = vmatpush1.msra.mxu0 0.0
    %682 = vmatprep.subr.mxu0 0.0
    %683 = vmatpush1.msra.mxu0 0.0
    %684 = vmatprep.mubr.f32.mxu0 0.0
    %685 = vmatmul.mubr.f32.gmra.mrb[0].mxu0 %v618
    %v686 = vpop.f32.mrb[0].mxu0
    %v687 = vadd.f32 0.0, %v686
    %v688 = vpop.f32.mrb[0].mxu0
    %689 = vdwg.mxu0
    %v691 = vsel %vm28, %v27, 0
    %693 = vmatprep.subr.mxu0 0.0
    %694 = vmatpush1.msra.mxu0 %v34
    %695 = vmatprep.subr.mxu0 0.0
    %696 = vmatpush1.msra.mxu0 0.0
    %697 = vmatprep.subr.mxu0 0.0
    %698 = vmatpush1.msra.mxu0 0.0
    %699 = vmatprep.subr.mxu0 0.0
    %700 = vmatpush1.msra.mxu0 0.0
    %701 = vmatprep.subr.mxu0 0.0
    %702 = vmatpush1.msra.mxu0 0.0
    %703 = vmatprep.subr.mxu0 0.0
    %704 = vmatpush1.msra.mxu0 0.0
    %705 = vmatprep.subr.mxu0 0.0
    %706 = vmatpush1.msra.mxu0 0.0
    %707 = vmatprep.subr.mxu0 0.0
    %708 = vmatpush1.msra.mxu0 0.0
    %709 = vmatprep.subr.mxu0 0.0
    %710 = vmatpush1.msra.mxu0 0.0
    %711 = vmatprep.subr.mxu0 0.0
    %712 = vmatpush1.msra.mxu0 0.0
    %713 = vmatprep.subr.mxu0 0.0
    %714 = vmatpush1.msra.mxu0 0.0
    %715 = vmatprep.subr.mxu0 0.0
    %716 = vmatpush1.msra.mxu0 0.0
    %717 = vmatprep.subr.mxu0 0.0
    %718 = vmatpush1.msra.mxu0 0.0
    %719 = vmatprep.subr.mxu0 0.0
    %720 = vmatpush1.msra.mxu0 0.0
    %721 = vmatprep.subr.mxu0 0.0
    %722 = vmatpush1.msra.mxu0 0.0
    %723 = vmatprep.subr.mxu0 0.0
    %724 = vmatpush1.msra.mxu0 0.0
    %725 = vmatprep.subr.mxu0 0.0
    %726 = vmatpush1.msra.mxu0 0.0
    %727 = vmatprep.subr.mxu0 0.0
    %728 = vmatpush1.msra.mxu0 0.0
    %729 = vmatprep.subr.mxu0 0.0
    %730 = vmatpush1.msra.mxu0 0.0
    %731 = vmatprep.subr.mxu0 0.0
    %732 = vmatpush1.msra.mxu0 0.0
    %733 = vmatprep.subr.mxu0 0.0
    %734 = vmatpush1.msra.mxu0 0.0
    %735 = vmatprep.subr.mxu0 0.0
    %736 = vmatpush1.msra.mxu0 0.0
    %737 = vmatprep.subr.mxu0 0.0
    %738 = vmatpush1.msra.mxu0 0.0
    %739 = vmatprep.subr.mxu0 0.0
    %740 = vmatpush1.msra.mxu0 0.0
    %741 = vmatprep.subr.mxu0 0.0
    %742 = vmatpush1.msra.mxu0 0.0
    %743 = vmatprep.subr.mxu0 0.0
    %744 = vmatpush1.msra.mxu0 0.0
    %745 = vmatprep.subr.mxu0 0.0
    %746 = vmatpush1.msra.mxu0 0.0
    %747 = vmatprep.subr.mxu0 0.0
    %748 = vmatpush1.msra.mxu0 0.0
    %749 = vmatprep.subr.mxu0 0.0
    %750 = vmatpush1.msra.mxu0 0.0
    %751 = vmatprep.subr.mxu0 0.0
    %752 = vmatpush1.msra.mxu0 0.0
    %753 = vmatprep.subr.mxu0 0.0
    %754 = vmatpush1.msra.mxu0 0.0
    %755 = vmatprep.subr.mxu0 0.0
    %756 = vmatpush1.msra.mxu0 0.0
    %757 = vmatprep.mubr.f32.mxu0 0.0
    %758 = vmatmul.mubr.f32.gmra.mrb[0].mxu0 %v691
    %v759 = vpop.f32.mrb[0].mxu0
    %v760 = vadd.f32 0.0, %v759
    %v761 = vpop.f32.mrb[0].mxu0
    %762 = vdwg.mxu0
    %v764 = vsel %vm28, %v16, 0
    %v767 = vsel %vm28, %v17, 0
    %v770 = vsel %vm32, %v103, 0
    %772 = vmatprep.subr.mxu0 0.0
    %773 = vmatpush1.msra.mxu0 %v770
    %774 = vmatprep.subr.mxu0 0.0
    %775 = vmatpush1.msra.mxu0 0.0
    %776 = vmatprep.subr.mxu0 0.0
    %777 = vmatpush1.msra.mxu0 0.0
    %778 = vmatprep.subr.mxu0 0.0
    %779 = vmatpush1.msra.mxu0 0.0
    %780 = vmatprep.subr.mxu0 0.0
    %781 = vmatpush1.msra.mxu0 0.0
    %782 = vmatprep.subr.mxu0 0.0
    %783 = vmatpush1.msra.mxu0 0.0
    %784 = vmatprep.subr.mxu0 0.0
    %785 = vmatpush1.msra.mxu0 0.0
    %786 = vmatprep.subr.mxu0 0.0
    %787 = vmatpush1.msra.mxu0 0.0
    %788 = vmatprep.subr.mxu0 0.0
    %789 = vmatpush1.msra.mxu0 0.0
    %790 = vmatprep.subr.mxu0 0.0
    %791 = vmatpush1.msra.mxu0 0.0
    %792 = vmatprep.subr.mxu0 0.0
    %793 = vmatpush1.msra.mxu0 0.0
    %794 = vmatprep.subr.mxu0 0.0
    %795 = vmatpush1.msra.mxu0 0.0
    %796 = vmatprep.subr.mxu0 0.0
    %797 = vmatpush1.msra.mxu0 0.0
    %798 = vmatprep.subr.mxu0 0.0
    %799 = vmatpush1.msra.mxu0 0.0
    %800 = vmatprep.subr.mxu0 0.0
    %801 = vmatpush1.msra.mxu0 0.0
    %802 = vmatprep.subr.mxu0 0.0
    %803 = vmatpush1.msra.mxu0 0.0
    %804 = vmatprep.subr.mxu0 0.0
    %805 = vmatpush1.msra.mxu0 0.0
    %806 = vmatprep.subr.mxu0 0.0
    %807 = vmatpush1.msra.mxu0 0.0
    %808 = vmatprep.subr.mxu0 0.0
    %809 = vmatpush1.msra.mxu0 0.0
    %810 = vmatprep.subr.mxu0 0.0
    %811 = vmatpush1.msra.mxu0 0.0
    %812 = vmatprep.subr.mxu0 0.0
    %813 = vmatpush1.msra.mxu0 0.0
    %814 = vmatprep.subr.mxu0 0.0
    %815 = vmatpush1.msra.mxu0 0.0
    %816 = vmatprep.subr.mxu0 0.0
    %817 = vmatpush1.msra.mxu0 0.0
    %818 = vmatprep.subr.mxu0 0.0
    %819 = vmatpush1.msra.mxu0 0.0
    %820 = vmatprep.subr.mxu0 0.0
    %821 = vmatpush1.msra.mxu0 0.0
    %822 = vmatprep.subr.mxu0 0.0
    %823 = vmatpush1.msra.mxu0 0.0
    %824 = vmatprep.subr.mxu0 0.0
    %825 = vmatpush1.msra.mxu0 0.0
    %826 = vmatprep.subr.mxu0 0.0
    %827 = vmatpush1.msra.mxu0 0.0
    %828 = vmatprep.subr.mxu0 0.0
    %829 = vmatpush1.msra.mxu0 0.0
    %830 = vmatprep.subr.mxu0 0.0
    %831 = vmatpush1.msra.mxu0 0.0
    %832 = vmatprep.subr.mxu0 0.0
    %833 = vmatpush1.msra.mxu0 0.0
    %834 = vmatprep.subr.mxu0 0.0
    %835 = vmatpush1.msra.mxu0 0.0
    %836 = vmatprep.mubr.f32.mxu0 0.0
    %837 = vmatmul.mubr.f32.gmra.mrb[0].mxu0 %v764
    %v838 = vpop.f32.mrb[0].mxu0
    %v839 = vadd.f32 0.0, %v838
    %v840 = vpop.f32.mrb[0].mxu0
    %841 = vmatprep.mubr.f32.mxu0 0.0
    %842 = vmatmul.mubr.f32.gmra.mrb[0].mxu0 %v767
    %v843 = vpop.f32.mrb[0].mxu0
    %v844 = vadd.f32 0.0, %v843
    %v845 = vpop.f32.mrb[0].mxu0
    %846 = vdwg.mxu0
    %v848 = vsel %vm32, %v176, 0
    %850 = vmatprep.subr.mxu0 0.0
    %851 = vmatpush1.msra.mxu0 %v848
    %852 = vmatprep.subr.mxu0 0.0
    %853 = vmatpush1.msra.mxu0 0.0
    %854 = vmatprep.subr.mxu0 0.0
    %855 = vmatpush1.msra.mxu0 0.0
    %856 = vmatprep.subr.mxu0 0.0
    %857 = vmatpush1.msra.mxu0 0.0
    %858 = vmatprep.subr.mxu0 0.0
    %859 = vmatpush1.msra.mxu0 0.0
    %860 = vmatprep.subr.mxu0 0.0
    %861 = vmatpush1.msra.mxu0 0.0
    %862 = vmatprep.subr.mxu0 0.0
    %863 = vmatpush1.msra.mxu0 0.0
    %864 = vmatprep.subr.mxu0 0.0
    %865 = vmatpush1.msra.mxu0 0.0
    %866 = vmatprep.subr.mxu0 0.0
    %867 = vmatpush1.msra.mxu0 0.0
    %868 = vmatprep.subr.mxu0 0.0
    %869 = vmatpush1.msra.mxu0 0.0
    %870 = vmatprep.subr.mxu0 0.0
    %871 = vmatpush1.msra.mxu0 0.0
    %872 = vmatprep.subr.mxu0 0.0
    %873 = vmatpush1.msra.mxu0 0.0
    %874 = vmatprep.subr.mxu0 0.0
    %875 = vmatpush1.msra.mxu0 0.0
    %876 = vmatprep.subr.mxu0 0.0
    %877 = vmatpush1.msra.mxu0 0.0
    %878 = vmatprep.subr.mxu0 0.0
    %879 = vmatpush1.msra.mxu0 0.0
    %880 = vmatprep.subr.mxu0 0.0
    %881 = vmatpush1.msra.mxu0 0.0
    %882 = vmatprep.subr.mxu0 0.0
    %883 = vmatpush1.msra.mxu0 0.0
    %884 = vmatprep.subr.mxu0 0.0
    %885 = vmatpush1.msra.mxu0 0.0
    %886 = vmatprep.subr.mxu0 0.0
    %887 = vmatpush1.msra.mxu0 0.0
    %888 = vmatprep.subr.mxu0 0.0
    %889 = vmatpush1.msra.mxu0 0.0
    %890 = vmatprep.subr.mxu0 0.0
    %891 = vmatpush1.msra.mxu0 0.0
    %892 = vmatprep.subr.mxu0 0.0
    %893 = vmatpush1.msra.mxu0 0.0
    %894 = vmatprep.subr.mxu0 0.0
    %895 = vmatpush1.msra.mxu0 0.0
    %896 = vmatprep.subr.mxu0 0.0
    %897 = vmatpush1.msra.mxu0 0.0
    %898 = vmatprep.subr.mxu0 0.0
    %899 = vmatpush1.msra.mxu0 0.0
    %900 = vmatprep.subr.mxu0 0.0
    %901 = vmatpush1.msra.mxu0 0.0
    %902 = vmatprep.subr.mxu0 0.0
    %903 = vmatpush1.msra.mxu0 0.0
    %904 = vmatprep.subr.mxu0 0.0
    %905 = vmatpush1.msra.mxu0 0.0
    %906 = vmatprep.subr.mxu0 0.0
    %907 = vmatpush1.msra.mxu0 0.0
    %908 = vmatprep.subr.mxu0 0.0
    %909 = vmatpush1.msra.mxu0 0.0
    %910 = vmatprep.subr.mxu0 0.0
    %911 = vmatpush1.msra.mxu0 0.0
    %912 = vmatprep.subr.mxu0 0.0
    %913 = vmatpush1.msra.mxu0 0.0
    %914 = vmatprep.mubr.f32.mxu0 0.0
    %915 = vmatmul.mubr.f32.gmra.mrb[0].mxu0 %v764
    %v916 = vpop.f32.mrb[0].mxu0
    %v917 = vadd.f32 0.0, %v916
    %v918 = vpop.f32.mrb[0].mxu0
    %919 = vmatprep.mubr.f32.mxu0 0.0
    %920 = vmatmul.mubr.f32.gmra.mrb[0].mxu0 %v767
    %v921 = vpop.f32.mrb[0].mxu0
    %v922 = vadd.f32 0.0, %v921
    %v923 = vpop.f32.mrb[0].mxu0
    %924 = vdwg.mxu0
    %v926 = vsel %vm32, %v249, 0
    %928 = vmatprep.subr.mxu0 0.0
    %929 = vmatpush1.msra.mxu0 %v926
    %930 = vmatprep.subr.mxu0 0.0
    %931 = vmatpush1.msra.mxu0 0.0
    %932 = vmatprep.subr.mxu0 0.0
    %933 = vmatpush1.msra.mxu0 0.0
    %934 = vmatprep.subr.mxu0 0.0
    %935 = vmatpush1.msra.mxu0 0.0
    %936 = vmatprep.subr.mxu0 0.0
    %937 = vmatpush1.msra.mxu0 0.0
    %938 = vmatprep.subr.mxu0 0.0
    %939 = vmatpush1.msra.mxu0 0.0
    %940 = vmatprep.subr.mxu0 0.0
    %941 = vmatpush1.msra.mxu0 0.0
    %942 = vmatprep.subr.mxu0 0.0
    %943 = vmatpush1.msra.mxu0 0.0
    %944 = vmatprep.subr.mxu0 0.0
    %945 = vmatpush1.msra.mxu0 0.0
    %946 = vmatprep.subr.mxu0 0.0
    %947 = vmatpush1.msra.mxu0 0.0
    %948 = vmatprep.subr.mxu0 0.0
    %949 = vmatpush1.msra.mxu0 0.0
    %950 = vmatprep.subr.mxu0 0.0
    %951 = vmatpush1.msra.mxu0 0.0
    %952 = vmatprep.subr.mxu0 0.0
    %953 = vmatpush1.msra.mxu0 0.0
    %954 = vmatprep.subr.mxu0 0.0
    %955 = vmatpush1.msra.mxu0 0.0
    %956 = vmatprep.subr.mxu0 0.0
    %957 = vmatpush1.msra.mxu0 0.0
    %958 = vmatprep.subr.mxu0 0.0
    %959 = vmatpush1.msra.mxu0 0.0
    %960 = vmatprep.subr.mxu0 0.0
    %961 = vmatpush1.msra.mxu0 0.0
    %962 = vmatprep.subr.mxu0 0.0
    %963 = vmatpush1.msra.mxu0 0.0
    %964 = vmatprep.subr.mxu0 0.0
    %965 = vmatpush1.msra.mxu0 0.0
    %966 = vmatprep.subr.mxu0 0.0
    %967 = vmatpush1.msra.mxu0 0.0
    %968 = vmatprep.subr.mxu0 0.0
    %969 = vmatpush1.msra.mxu0 0.0
    %970 = vmatprep.subr.mxu0 0.0
    %971 = vmatpush1.msra.mxu0 0.0
    %972 = vmatprep.subr.mxu0 0.0
    %973 = vmatpush1.msra.mxu0 0.0
    %974 = vmatprep.subr.mxu0 0.0
    %975 = vmatpush1.msra.mxu0 0.0
    %976 = vmatprep.subr.mxu0 0.0
    %977 = vmatpush1.msra.mxu0 0.0
    %978 = vmatprep.subr.mxu0 0.0
    %979 = vmatpush1.msra.mxu0 0.0
    %980 = vmatprep.subr.mxu0 0.0
    %981 = vmatpush1.msra.mxu0 0.0
    %982 = vmatprep.subr.mxu0 0.0
    %983 = vmatpush1.msra.mxu0 0.0
    %984 = vmatprep.subr.mxu0 0.0
    %985 = vmatpush1.msra.mxu0 0.0
    %986 = vmatprep.subr.mxu0 0.0
    %987 = vmatpush1.msra.mxu0 0.0
    %988 = vmatprep.subr.mxu0 0.0
    %989 = vmatpush1.msra.mxu0 0.0
    %990 = vmatprep.subr.mxu0 0.0
    %991 = vmatpush1.msra.mxu0 0.0
    %992 = vmatprep.mubr.f32.mxu0 0.0
    %993 = vmatmul.mubr.f32.gmra.mrb[0].mxu0 %v764
    %v994 = vpop.f32.mrb[0].mxu0
    %v995 = vadd.f32 0.0, %v994
    %v996 = vpop.f32.mrb[0].mxu0
    %997 = vmatprep.mubr.f32.mxu0 0.0
    %998 = vmatmul.mubr.f32.gmra.mrb[0].mxu0 %v767
    %v999 = vpop.f32.mrb[0].mxu0
    %v1000 = vadd.f32 0.0, %v999
    %v1001 = vpop.f32.mrb[0].mxu0
    %1002 = vdwg.mxu0
    %v1004 = vsel %vm32, %v322, 0
    %1006 = vmatprep.subr.mxu0 0.0
    %1007 = vmatpush1.msra.mxu0 %v1004
    %1008 = vmatprep.subr.mxu0 0.0
    %1009 = vmatpush1.msra.mxu0 0.0
    %1010 = vmatprep.subr.mxu0 0.0
    %1011 = vmatpush1.msra.mxu0 0.0
    %1012 = vmatprep.subr.mxu0 0.0
    %1013 = vmatpush1.msra.mxu0 0.0
    %1014 = vmatprep.subr.mxu0 0.0
    %1015 = vmatpush1.msra.mxu0 0.0
    %1016 = vmatprep.subr.mxu0 0.0
    %1017 = vmatpush1.msra.mxu0 0.0
    %1018 = vmatprep.subr.mxu0 0.0
    %1019 = vmatpush1.msra.mxu0 0.0
    %1020 = vmatprep.subr.mxu0 0.0
    %1021 = vmatpush1.msra.mxu0 0.0
    %1022 = vmatprep.subr.mxu0 0.0
    %1023 = vmatpush1.msra.mxu0 0.0
    %1024 = vmatprep.subr.mxu0 0.0
    %1025 = vmatpush1.msra.mxu0 0.0
    %1026 = vmatprep.subr.mxu0 0.0
    %1027 = vmatpush1.msra.mxu0 0.0
    %1028 = vmatprep.subr.mxu0 0.0
    %1029 = vmatpush1.msra.mxu0 0.0
    %1030 = vmatprep.subr.mxu0 0.0
    %1031 = vmatpush1.msra.mxu0 0.0
    %1032 = vmatprep.subr.mxu0 0.0
    %1033 = vmatpush1.msra.mxu0 0.0
    %1034 = vmatprep.subr.mxu0 0.0
    %1035 = vmatpush1.msra.mxu0 0.0
    %1036 = vmatprep.subr.mxu0 0.0
    %1037 = vmatpush1.msra.mxu0 0.0
    %1038 = vmatprep.subr.mxu0 0.0
    %1039 = vmatpush1.msra.mxu0 0.0
    %1040 = vmatprep.subr.mxu0 0.0
    %1041 = vmatpush1.msra.mxu0 0.0
    %1042 = vmatprep.subr.mxu0 0.0
    %1043 = vmatpush1.msra.mxu0 0.0
    %1044 = vmatprep.subr.mxu0 0.0
    %1045 = vmatpush1.msra.mxu0 0.0
    %1046 = vmatprep.subr.mxu0 0.0
    %1047 = vmatpush1.msra.mxu0 0.0
    %1048 = vmatprep.subr.mxu0 0.0
    %1049 = vmatpush1.msra.mxu0 0.0
    %1050 = vmatprep.subr.mxu0 0.0
    %1051 = vmatpush1.msra.mxu0 0.0
    %1052 = vmatprep.subr.mxu0 0.0
    %1053 = vmatpush1.msra.mxu0 0.0
    %1054 = vmatprep.subr.mxu0 0.0
    %1055 = vmatpush1.msra.mxu0 0.0
    %1056 = vmatprep.subr.mxu0 0.0
    %1057 = vmatpush1.msra.mxu0 0.0
    %1058 = vmatprep.subr.mxu0 0.0
    %1059 = vmatpush1.msra.mxu0 0.0
    %1060 = vmatprep.subr.mxu0 0.0
    %1061 = vmatpush1.msra.mxu0 0.0
    %1062 = vmatprep.subr.mxu0 0.0
    %1063 = vmatpush1.msra.mxu0 0.0
    %1064 = vmatprep.subr.mxu0 0.0
    %1065 = vmatpush1.msra.mxu0 0.0
    %1066 = vmatprep.subr.mxu0 0.0
    %1067 = vmatpush1.msra.mxu0 0.0
    %1068 = vmatprep.subr.mxu0 0.0
    %1069 = vmatpush1.msra.mxu0 0.0
    %1070 = vmatprep.mubr.f32.mxu0 0.0
    %1071 = vmatmul.mubr.f32.gmra.mrb[0].mxu0 %v764
    %v1072 = vpop.f32.mrb[0].mxu0
    %v1073 = vadd.f32 0.0, %v1072
    %v1074 = vpop.f32.mrb[0].mxu0
    %1075 = vmatprep.mubr.f32.mxu0 0.0
    %1076 = vmatmul.mubr.f32.gmra.mrb[0].mxu0 %v767
    %v1077 = vpop.f32.mrb[0].mxu0
    %v1078 = vadd.f32 0.0, %v1077
    %v1079 = vpop.f32.mrb[0].mxu0
    %1080 = vdwg.mxu0
    %v1082 = vsel %vm32, %v395, 0
    %1084 = vmatprep.subr.mxu0 0.0
    %1085 = vmatpush1.msra.mxu0 %v1082
    %1086 = vmatprep.subr.mxu0 0.0
    %1087 = vmatpush1.msra.mxu0 0.0
    %1088 = vmatprep.subr.mxu0 0.0
    %1089 = vmatpush1.msra.mxu0 0.0
    %1090 = vmatprep.subr.mxu0 0.0
    %1091 = vmatpush1.msra.mxu0 0.0
    %1092 = vmatprep.subr.mxu0 0.0
    %1093 = vmatpush1.msra.mxu0 0.0
    %1094 = vmatprep.subr.mxu0 0.0
    %1095 = vmatpush1.msra.mxu0 0.0
    %1096 = vmatprep.subr.mxu0 0.0
    %1097 = vmatpush1.msra.mxu0 0.0
    %1098 = vmatprep.subr.mxu0 0.0
    %1099 = vmatpush1.msra.mxu0 0.0
    %1100 = vmatprep.subr.mxu0 0.0
    %1101 = vmatpush1.msra.mxu0 0.0
    %1102 = vmatprep.subr.mxu0 0.0
    %1103 = vmatpush1.msra.mxu0 0.0
    %1104 = vmatprep.subr.mxu0 0.0
    %1105 = vmatpush1.msra.mxu0 0.0
    %1106 = vmatprep.subr.mxu0 0.0
    %1107 = vmatpush1.msra.mxu0 0.0
    %1108 = vmatprep.subr.mxu0 0.0
    %1109 = vmatpush1.msra.mxu0 0.0
    %1110 = vmatprep.subr.mxu0 0.0
    %1111 = vmatpush1.msra.mxu0 0.0
    %1112 = vmatprep.subr.mxu0 0.0
    %1113 = vmatpush1.msra.mxu0 0.0
    %1114 = vmatprep.subr.mxu0 0.0
    %1115 = vmatpush1.msra.mxu0 0.0
    %1116 = vmatprep.subr.mxu0 0.0
    %1117 = vmatpush1.msra.mxu0 0.0
    %1118 = vmatprep.subr.mxu0 0.0
    %1119 = vmatpush1.msra.mxu0 0.0
    %1120 = vmatprep.subr.mxu0 0.0
    %1121 = vmatpush1.msra.mxu0 0.0
    %1122 = vmatprep.subr.mxu0 0.0
    %1123 = vmatpush1.msra.mxu0 0.0
    %1124 = vmatprep.subr.mxu0 0.0
    %1125 = vmatpush1.msra.mxu0 0.0
    %1126 = vmatprep.subr.mxu0 0.0
    %1127 = vmatpush1.msra.mxu0 0.0
    %1128 = vmatprep.subr.mxu0 0.0
    %1129 = vmatpush1.msra.mxu0 0.0
    %1130 = vmatprep.subr.mxu0 0.0
    %1131 = vmatpush1.msra.mxu0 0.0
    %1132 = vmatprep.subr.mxu0 0.0
    %1133 = vmatpush1.msra.mxu0 0.0
    %1134 = vmatprep.subr.mxu0 0.0
    %1135 = vmatpush1.msra.mxu0 0.0
    %1136 = vmatprep.subr.mxu0 0.0
    %1137 = vmatpush1.msra.mxu0 0.0
    %1138 = vmatprep.subr.mxu0 0.0
    %1139 = vmatpush1.msra.mxu0 0.0
    %1140 = vmatprep.subr.mxu0 0.0
    %1141 = vmatpush1.msra.mxu0 0.0
    %1142 = vmatprep.subr.mxu0 0.0
    %1143 = vmatpush1.msra.mxu0 0.0
    %1144 = vmatprep.subr.mxu0 0.0
    %1145 = vmatpush1.msra.mxu0 0.0
    %1146 = vmatprep.subr.mxu0 0.0
    %1147 = vmatpush1.msra.mxu0 0.0
    %1148 = vmatprep.mubr.f32.mxu0 0.0
    %1149 = vmatmul.mubr.f32.gmra.mrb[0].mxu0 %v764
    %v1150 = vpop.f32.mrb[0].mxu0
    %v1151 = vadd.f32 0.0, %v1150
    %v1152 = vpop.f32.mrb[0].mxu0
    %1153 = vmatprep.mubr.f32.mxu0 0.0
    %1154 = vmatmul.mubr.f32.gmra.mrb[0].mxu0 %v767
    %v1155 = vpop.f32.mrb[0].mxu0
    %v1156 = vadd.f32 0.0, %v1155
    %v1157 = vpop.f32.mrb[0].mxu0
    %1158 = vdwg.mxu0
    %v1160 = vsel %vm32, %v468, 0
    %1162 = vmatprep.subr.mxu0 0.0
    %1163 = vmatpush1.msra.mxu0 %v1160
    %1164 = vmatprep.subr.mxu0 0.0
    %1165 = vmatpush1.msra.mxu0 0.0
    %1166 = vmatprep.subr.mxu0 0.0
    %1167 = vmatpush1.msra.mxu0 0.0
    %1168 = vmatprep.subr.mxu0 0.0
    %1169 = vmatpush1.msra.mxu0 0.0
    %1170 = vmatprep.subr.mxu0 0.0
    %1171 = vmatpush1.msra.mxu0 0.0
    %1172 = vmatprep.subr.mxu0 0.0
    %1173 = vmatpush1.msra.mxu0 0.0
    %1174 = vmatprep.subr.mxu0 0.0
    %1175 = vmatpush1.msra.mxu0 0.0
    %1176 = vmatprep.subr.mxu0 0.0
    %1177 = vmatpush1.msra.mxu0 0.0
    %1178 = vmatprep.subr.mxu0 0.0
    %1179 = vmatpush1.msra.mxu0 0.0
    %1180 = vmatprep.subr.mxu0 0.0
    %1181 = vmatpush1.msra.mxu0 0.0
    %1182 = vmatprep.subr.mxu0 0.0
    %1183 = vmatpush1.msra.mxu0 0.0
    %1184 = vmatprep.subr.mxu0 0.0
    %1185 = vmatpush1.msra.mxu0 0.0
    %1186 = vmatprep.subr.mxu0 0.0
    %1187 = vmatpush1.msra.mxu0 0.0
    %1188 = vmatprep.subr.mxu0 0.0
    %1189 = vmatpush1.msra.mxu0 0.0
    %1190 = vmatprep.subr.mxu0 0.0
    %1191 = vmatpush1.msra.mxu0 0.0
    %1192 = vmatprep.subr.mxu0 0.0
    %1193 = vmatpush1.msra.mxu0 0.0
    %1194 = vmatprep.subr.mxu0 0.0
    %1195 = vmatpush1.msra.mxu0 0.0
    %1196 = vmatprep.subr.mxu0 0.0
    %1197 = vmatpush1.msra.mxu0 0.0
    %1198 = vmatprep.subr.mxu0 0.0
    %1199 = vmatpush1.msra.mxu0 0.0
    %1200 = vmatprep.subr.mxu0 0.0
    %1201 = vmatpush1.msra.mxu0 0.0
    %1202 = vmatprep.subr.mxu0 0.0
    %1203 = vmatpush1.msra.mxu0 0.0
    %1204 = vmatprep.subr.mxu0 0.0
    %1205 = vmatpush1.msra.mxu0 0.0
    %1206 = vmatprep.subr.mxu0 0.0
    %1207 = vmatpush1.msra.mxu0 0.0
    %1208 = vmatprep.subr.mxu0 0.0
    %1209 = vmatpush1.msra.mxu0 0.0
    %1210 = vmatprep.subr.mxu0 0.0
    %1211 = vmatpush1.msra.mxu0 0.0
    %1212 = vmatprep.subr.mxu0 0.0
    %1213 = vmatpush1.msra.mxu0 0.0
    %1214 = vmatprep.subr.mxu0 0.0
    %1215 = vmatpush1.msra.mxu0 0.0
    %1216 = vmatprep.subr.mxu0 0.0
    %1217 = vmatpush1.msra.mxu0 0.0
    %1218 = vmatprep.subr.mxu0 0.0
    %1219 = vmatpush1.msra.mxu0 0.0
    %1220 = vmatprep.subr.mxu0 0.0
    %1221 = vmatpush1.msra.mxu0 0.0
    %1222 = vmatprep.subr.mxu0 0.0
    %1223 = vmatpush1.msra.mxu0 0.0
    %1224 = vmatprep.subr.mxu0 0.0
    %1225 = vmatpush1.msra.mxu0 0.0
    %1226 = vmatprep.mubr.f32.mxu0 0.0
    %1227 = vmatmul.mubr.f32.gmra.mrb[0].mxu0 %v764
    %v1228 = vpop.f32.mrb[0].mxu0
    %v1229 = vadd.f32 0.0, %v1228
    %v1230 = vpop.f32.mrb[0].mxu0
    %1231 = vmatprep.mubr.f32.mxu0 0.0
    %1232 = vmatmul.mubr.f32.gmra.mrb[0].mxu0 %v767
    %v1233 = vpop.f32.mrb[0].mxu0
    %v1234 = vadd.f32 0.0, %v1233
    %v1235 = vpop.f32.mrb[0].mxu0
    %1236 = vdwg.mxu0
    %v1238 = vsel %vm32, %v541, 0
    %1240 = vmatprep.subr.mxu0 0.0
    %1241 = vmatpush1.msra.mxu0 %v1238
    %1242 = vmatprep.subr.mxu0 0.0
    %1243 = vmatpush1.msra.mxu0 0.0
    %1244 = vmatprep.subr.mxu0 0.0
    %1245 = vmatpush1.msra.mxu0 0.0
    %1246 = vmatprep.subr.mxu0 0.0
    %1247 = vmatpush1.msra.mxu0 0.0
    %1248 = vmatprep.subr.mxu0 0.0
    %1249 = vmatpush1.msra.mxu0 0.0
    %1250 = vmatprep.subr.mxu0 0.0
    %1251 = vmatpush1.msra.mxu0 0.0
    %1252 = vmatprep.subr.mxu0 0.0
    %1253 = vmatpush1.msra.mxu0 0.0
    %1254 = vmatprep.subr.mxu0 0.0
    %1255 = vmatpush1.msra.mxu0 0.0
    %1256 = vmatprep.subr.mxu0 0.0
    %1257 = vmatpush1.msra.mxu0 0.0
    %1258 = vmatprep.subr.mxu0 0.0
    %1259 = vmatpush1.msra.mxu0 0.0
    %1260 = vmatprep.subr.mxu0 0.0
    %1261 = vmatpush1.msra.mxu0 0.0
    %1262 = vmatprep.subr.mxu0 0.0
    %1263 = vmatpush1.msra.mxu0 0.0
    %1264 = vmatprep.subr.mxu0 0.0
    %1265 = vmatpush1.msra.mxu0 0.0
    %1266 = vmatprep.subr.mxu0 0.0
    %1267 = vmatpush1.msra.mxu0 0.0
    %1268 = vmatprep.subr.mxu0 0.0
    %1269 = vmatpush1.msra.mxu0 0.0
    %1270 = vmatprep.subr.mxu0 0.0
    %1271 = vmatpush1.msra.mxu0 0.0
    %1272 = vmatprep.subr.mxu0 0.0
    %1273 = vmatpush1.msra.mxu0 0.0
    %1274 = vmatprep.subr.mxu0 0.0
    %1275 = vmatpush1.msra.mxu0 0.0
    %1276 = vmatprep.subr.mxu0 0.0
    %1277 = vmatpush1.msra.mxu0 0.0
    %1278 = vmatprep.subr.mxu0 0.0
    %1279 = vmatpush1.msra.mxu0 0.0
    %1280 = vmatprep.subr.mxu0 0.0
    %1281 = vmatpush1.msra.mxu0 0.0
    %1282 = vmatprep.subr.mxu0 0.0
    %1283 = vmatpush1.msra.mxu0 0.0
    %1284 = vmatprep.subr.mxu0 0.0
    %1285 = vmatpush1.msra.mxu0 0.0
    %1286 = vmatprep.subr.mxu0 0.0
    %1287 = vmatpush1.msra.mxu0 0.0
    %1288 = vmatprep.subr.mxu0 0.0
    %1289 = vmatpush1.msra.mxu0 0.0
    %1290 = vmatprep.subr.mxu0 0.0
    %1291 = vmatpush1.msra.mxu0 0.0
    %1292 = vmatprep.subr.mxu0 0.0
    %1293 = vmatpush1.msra.mxu0 0.0
    %1294 = vmatprep.subr.mxu0 0.0
    %1295 = vmatpush1.msra.mxu0 0.0
    %1296 = vmatprep.subr.mxu0 0.0
    %1297 = vmatpush1.msra.mxu0 0.0
    %1298 = vmatprep.subr.mxu0 0.0
    %1299 = vmatpush1.msra.mxu0 0.0
    %1300 = vmatprep.subr.mxu0 0.0
    %1301 = vmatpush1.msra.mxu0 0.0
    %1302 = vmatprep.subr.mxu0 0.0
    %1303 = vmatpush1.msra.mxu0 0.0
    %1304 = vmatprep.mubr.f32.mxu0 0.0
    %1305 = vmatmul.mubr.f32.gmra.mrb[0].mxu0 %v764
    %v1306 = vpop.f32.mrb[0].mxu0
    %v1307 = vadd.f32 0.0, %v1306
    %v1308 = vpop.f32.mrb[0].mxu0
    %1309 = vmatprep.mubr.f32.mxu0 0.0
    %1310 = vmatmul.mubr.f32.gmra.mrb[0].mxu0 %v767
    %v1311 = vpop.f32.mrb[0].mxu0
    %v1312 = vadd.f32 0.0, %v1311
    %v1313 = vpop.f32.mrb[0].mxu0
    %1314 = vdwg.mxu0
    %v1316 = vsel %vm32, %v614, 0
    %1318 = vmatprep.subr.mxu0 0.0
    %1319 = vmatpush1.msra.mxu0 %v1316
    %1320 = vmatprep.subr.mxu0 0.0
    %1321 = vmatpush1.msra.mxu0 0.0
    %1322 = vmatprep.subr.mxu0 0.0
    %1323 = vmatpush1.msra.mxu0 0.0
    %1324 = vmatprep.subr.mxu0 0.0
    %1325 = vmatpush1.msra.mxu0 0.0
    %1326 = vmatprep.subr.mxu0 0.0
    %1327 = vmatpush1.msra.mxu0 0.0
    %1328 = vmatprep.subr.mxu0 0.0
    %1329 = vmatpush1.msra.mxu0 0.0
    %1330 = vmatprep.subr.mxu0 0.0
    %1331 = vmatpush1.msra.mxu0 0.0
    %1332 = vmatprep.subr.mxu0 0.0
    %1333 = vmatpush1.msra.mxu0 0.0
    %1334 = vmatprep.subr.mxu0 0.0
    %1335 = vmatpush1.msra.mxu0 0.0
    %1336 = vmatprep.subr.mxu0 0.0
    %1337 = vmatpush1.msra.mxu0 0.0
    %1338 = vmatprep.subr.mxu0 0.0
    %1339 = vmatpush1.msra.mxu0 0.0
    %1340 = vmatprep.subr.mxu0 0.0
    %1341 = vmatpush1.msra.mxu0 0.0
    %1342 = vmatprep.subr.mxu0 0.0
    %1343 = vmatpush1.msra.mxu0 0.0
    %1344 = vmatprep.subr.mxu0 0.0
    %1345 = vmatpush1.msra.mxu0 0.0
    %1346 = vmatprep.subr.mxu0 0.0
    %1347 = vmatpush1.msra.mxu0 0.0
    %1348 = vmatprep.subr.mxu0 0.0
    %1349 = vmatpush1.msra.mxu0 0.0
    %1350 = vmatprep.subr.mxu0 0.0
    %1351 = vmatpush1.msra.mxu0 0.0
    %1352 = vmatprep.subr.mxu0 0.0
    %1353 = vmatpush1.msra.mxu0 0.0
    %1354 = vmatprep.subr.mxu0 0.0
    %1355 = vmatpush1.msra.mxu0 0.0
    %1356 = vmatprep.subr.mxu0 0.0
    %1357 = vmatpush1.msra.mxu0 0.0
    %1358 = vmatprep.subr.mxu0 0.0
    %1359 = vmatpush1.msra.mxu0 0.0
    %1360 = vmatprep.subr.mxu0 0.0
    %1361 = vmatpush1.msra.mxu0 0.0
    %1362 = vmatprep.subr.mxu0 0.0
    %1363 = vmatpush1.msra.mxu0 0.0
    %1364 = vmatprep.subr.mxu0 0.0
    %1365 = vmatpush1.msra.mxu0 0.0
    %1366 = vmatprep.subr.mxu0 0.0
    %1367 = vmatpush1.msra.mxu0 0.0
    %1368 = vmatprep.subr.mxu0 0.0
    %1369 = vmatpush1.msra.mxu0 0.0
    %1370 = vmatprep.subr.mxu0 0.0
    %1371 = vmatpush1.msra.mxu0 0.0
    %1372 = vmatprep.subr.mxu0 0.0
    %1373 = vmatpush1.msra.mxu0 0.0
    %1374 = vmatprep.subr.mxu0 0.0
    %1375 = vmatpush1.msra.mxu0 0.0
    %1376 = vmatprep.subr.mxu0 0.0
    %1377 = vmatpush1.msra.mxu0 0.0
    %1378 = vmatprep.subr.mxu0 0.0
    %1379 = vmatpush1.msra.mxu0 0.0
    %1380 = vmatprep.subr.mxu0 0.0
    %1381 = vmatpush1.msra.mxu0 0.0
    %1382 = vmatprep.mubr.f32.mxu0 0.0
    %1383 = vmatmul.mubr.f32.gmra.mrb[0].mxu0 %v764
    %v1384 = vpop.f32.mrb[0].mxu0
    %v1385 = vadd.f32 0.0, %v1384
    %v1386 = vpop.f32.mrb[0].mxu0
    %1387 = vmatprep.mubr.f32.mxu0 0.0
    %1388 = vmatmul.mubr.f32.gmra.mrb[0].mxu0 %v767
    %v1389 = vpop.f32.mrb[0].mxu0
    %v1390 = vadd.f32 0.0, %v1389
    %v1391 = vpop.f32.mrb[0].mxu0
    %1392 = vdwg.mxu0
    %v1394 = vsel %vm32, %v687, 0
    %1396 = vmatprep.subr.mxu0 0.0
    %1397 = vmatpush1.msra.mxu0 %v1394
    %1398 = vmatprep.subr.mxu0 0.0
    %1399 = vmatpush1.msra.mxu0 0.0
    %1400 = vmatprep.subr.mxu0 0.0
    %1401 = vmatpush1.msra.mxu0 0.0
    %1402 = vmatprep.subr.mxu0 0.0
    %1403 = vmatpush1.msra.mxu0 0.0
    %1404 = vmatprep.subr.mxu0 0.0
    %1405 = vmatpush1.msra.mxu0 0.0
    %1406 = vmatprep.subr.mxu0 0.0
    %1407 = vmatpush1.msra.mxu0 0.0
    %1408 = vmatprep.subr.mxu0 0.0
    %1409 = vmatpush1.msra.mxu0 0.0
    %1410 = vmatprep.subr.mxu0 0.0
    %1411 = vmatpush1.msra.mxu0 0.0
    %1412 = vmatprep.subr.mxu0 0.0
    %1413 = vmatpush1.msra.mxu0 0.0
    %1414 = vmatprep.subr.mxu0 0.0
    %1415 = vmatpush1.msra.mxu0 0.0
    %1416 = vmatprep.subr.mxu0 0.0
    %1417 = vmatpush1.msra.mxu0 0.0
    %1418 = vmatprep.subr.mxu0 0.0
    %1419 = vmatpush1.msra.mxu0 0.0
    %1420 = vmatprep.subr.mxu0 0.0
    %1421 = vmatpush1.msra.mxu0 0.0
    %1422 = vmatprep.subr.mxu0 0.0
    %1423 = vmatpush1.msra.mxu0 0.0
    %1424 = vmatprep.subr.mxu0 0.0
    %1425 = vmatpush1.msra.mxu0 0.0
    %1426 = vmatprep.subr.mxu0 0.0
    %1427 = vmatpush1.msra.mxu0 0.0
    %1428 = vmatprep.subr.mxu0 0.0
    %1429 = vmatpush1.msra.mxu0 0.0
    %1430 = vmatprep.subr.mxu0 0.0
    %1431 = vmatpush1.msra.mxu0 0.0
    %1432 = vmatprep.subr.mxu0 0.0
    %1433 = vmatpush1.msra.mxu0 0.0
    %1434 = vmatprep.subr.mxu0 0.0
    %1435 = vmatpush1.msra.mxu0 0.0
    %1436 = vmatprep.subr.mxu0 0.0
    %1437 = vmatpush1.msra.mxu0 0.0
    %1438 = vmatprep.subr.mxu0 0.0
    %1439 = vmatpush1.msra.mxu0 0.0
    %1440 = vmatprep.subr.mxu0 0.0
    %1441 = vmatpush1.msra.mxu0 0.0
    %1442 = vmatprep.subr.mxu0 0.0
    %1443 = vmatpush1.msra.mxu0 0.0
    %1444 = vmatprep.subr.mxu0 0.0
    %1445 = vmatpush1.msra.mxu0 0.0
    %1446 = vmatprep.subr.mxu0 0.0
    %1447 = vmatpush1.msra.mxu0 0.0
    %1448 = vmatprep.subr.mxu0 0.0
    %1449 = vmatpush1.msra.mxu0 0.0
    %1450 = vmatprep.subr.mxu0 0.0
    %1451 = vmatpush1.msra.mxu0 0.0
    %1452 = vmatprep.subr.mxu0 0.0
    %1453 = vmatpush1.msra.mxu0 0.0
    %1454 = vmatprep.subr.mxu0 0.0
    %1455 = vmatpush1.msra.mxu0 0.0
    %1456 = vmatprep.subr.mxu0 0.0
    %1457 = vmatpush1.msra.mxu0 0.0
    %1458 = vmatprep.subr.mxu0 0.0
    %1459 = vmatpush1.msra.mxu0 0.0
    %1460 = vmatprep.mubr.f32.mxu0 0.0
    %1461 = vmatmul.mubr.f32.gmra.mrb[0].mxu0 %v764
    %v1462 = vpop.f32.mrb[0].mxu0
    %v1463 = vadd.f32 0.0, %v1462
    %v1464 = vpop.f32.mrb[0].mxu0
    %1465 = vmatprep.mubr.f32.mxu0 0.0
    %1466 = vmatmul.mubr.f32.gmra.mrb[0].mxu0 %v767
    %v1467 = vpop.f32.mrb[0].mxu0
    %v1468 = vadd.f32 0.0, %v1467
    %v1469 = vpop.f32.mrb[0].mxu0
    %1470 = vdwg.mxu0
    %v1472 = vsel %vm32, %v760, 0
    %1474 = vmatprep.subr.mxu0 0.0
    %1475 = vmatpush1.msra.mxu0 %v1472
    %1476 = vmatprep.subr.mxu0 0.0
    %1477 = vmatpush1.msra.mxu0 0.0
    %1478 = vmatprep.subr.mxu0 0.0
    %1479 = vmatpush1.msra.mxu0 0.0
    %1480 = vmatprep.subr.mxu0 0.0
    %1481 = vmatpush1.msra.mxu0 0.0
    %1482 = vmatprep.subr.mxu0 0.0
    %1483 = vmatpush1.msra.mxu0 0.0
    %1484 = vmatprep.subr.mxu0 0.0
    %1485 = vmatpush1.msra.mxu0 0.0
    %1486 = vmatprep.subr.mxu0 0.0
    %1487 = vmatpush1.msra.mxu0 0.0
    %1488 = vmatprep.subr.mxu0 0.0
    %1489 = vmatpush1.msra.mxu0 0.0
    %1490 = vmatprep.subr.mxu0 0.0
    %1491 = vmatpush1.msra.mxu0 0.0
    %1492 = vmatprep.subr.mxu0 0.0
    %1493 = vmatpush1.msra.mxu0 0.0
    %1494 = vmatprep.subr.mxu0 0.0
    %1495 = vmatpush1.msra.mxu0 0.0
    %1496 = vmatprep.subr.mxu0 0.0
    %1497 = vmatpush1.msra.mxu0 0.0
    %1498 = vmatprep.subr.mxu0 0.0
    %1499 = vmatpush1.msra.mxu0 0.0
    %1500 = vmatprep.subr.mxu0 0.0
    %1501 = vmatpush1.msra.mxu0 0.0
    %1502 = vmatprep.subr.mxu0 0.0
    %1503 = vmatpush1.msra.mxu0 0.0
    %1504 = vmatprep.subr.mxu0 0.0
    %1505 = vmatpush1.msra.mxu0 0.0
    %1506 = vmatprep.subr.mxu0 0.0
    %1507 = vmatpush1.msra.mxu0 0.0
    %1508 = vmatprep.subr.mxu0 0.0
    %1509 = vmatpush1.msra.mxu0 0.0
    %1510 = vmatprep.subr.mxu0 0.0
    %1511 = vmatpush1.msra.mxu0 0.0
    %1512 = vmatprep.subr.mxu0 0.0
    %1513 = vmatpush1.msra.mxu0 0.0
    %1514 = vmatprep.subr.mxu0 0.0
    %1515 = vmatpush1.msra.mxu0 0.0
    %1516 = vmatprep.subr.mxu0 0.0
    %1517 = vmatpush1.msra.mxu0 0.0
    %1518 = vmatprep.subr.mxu0 0.0
    %1519 = vmatpush1.msra.mxu0 0.0
    %1520 = vmatprep.subr.mxu0 0.0
    %1521 = vmatpush1.msra.mxu0 0.0
    %1522 = vmatprep.subr.mxu0 0.0
    %1523 = vmatpush1.msra.mxu0 0.0
    %1524 = vmatprep.subr.mxu0 0.0
    %1525 = vmatpush1.msra.mxu0 0.0
    %1526 = vmatprep.subr.mxu0 0.0
    %1527 = vmatpush1.msra.mxu0 0.0
    %1528 = vmatprep.subr.mxu0 0.0
    %1529 = vmatpush1.msra.mxu0 0.0
    %1530 = vmatprep.subr.mxu0 0.0
    %1531 = vmatpush1.msra.mxu0 0.0
    %1532 = vmatprep.subr.mxu0 0.0
    %1533 = vmatpush1.msra.mxu0 0.0
    %1534 = vmatprep.subr.mxu0 0.0
    %1535 = vmatpush1.msra.mxu0 0.0
    %1536 = vmatprep.subr.mxu0 0.0
    %1537 = vmatpush1.msra.mxu0 0.0
    %1538 = vmatprep.mubr.f32.mxu0 0.0
    %1539 = vmatmul.mubr.f32.gmra.mrb[0].mxu0 %v764
    %v1540 = vpop.f32.mrb[0].mxu0
    %v1541 = vadd.f32 0.0, %v1540
    %v1542 = vpop.f32.mrb[0].mxu0
    %1543 = vmatprep.mubr.f32.mxu0 0.0
    %1544 = vmatmul.mubr.f32.gmra.mrb[0].mxu0 %v767
    %v1545 = vpop.f32.mrb[0].mxu0
    %v1546 = vadd.f32 0.0, %v1545
    %v1547 = vpop.f32.mrb[0].mxu0
    %1548 = vdwg.mxu0
    %vm1549 = vcmask 130048
    %1550 = vst.msk [vmem:[#allocation2] sm:$0xff] %vm1549, %v839
    %1551 = vst.msk [vmem:[#allocation2 + $0x8] sm:$0xff] %vm1549, %v844
    %1552 = vst.msk [vmem:[#allocation2 + $0x10] sm:$0xff] %vm1549, %v917
    %1553 = vst.msk [vmem:[#allocation2 + $0x18] sm:$0xff] %vm1549, %v922
    %1554 = vst.msk [vmem:[#allocation2 + $0x20] sm:$0xff] %vm1549, %v995
    %1555 = vst.msk [vmem:[#allocation2 + $0x28] sm:$0xff] %vm1549, %v1000
    %1556 = vst.msk [vmem:[#allocation2 + $0x30] sm:$0xff] %vm1549, %v1073
    %1557 = vst.msk [vmem:[#allocation2 + $0x38] sm:$0xff] %vm1549, %v1078
    %1558 = vst.msk [vmem:[#allocation2 + $0x40] sm:$0xff] %vm1549, %v1151
    %1559 = vst.msk [vmem:[#allocation2 + $0x48] sm:$0xff] %vm1549, %v1156
    %1560 = vst.msk [vmem:[#allocation2 + $0x50] sm:$0xff] %vm1549, %v1229
    %1561 = vst.msk [vmem:[#allocation2 + $0x58] sm:$0xff] %vm1549, %v1234
    %1562 = vst.msk [vmem:[#allocation2 + $0x60] sm:$0xff] %vm1549, %v1307
    %1563 = vst.msk [vmem:[#allocation2 + $0x68] sm:$0xff] %vm1549, %v1312
    %1564 = vst.msk [vmem:[#allocation2 + $0x70] sm:$0xff] %vm1549, %v1385
    %1565 = vst.msk [vmem:[#allocation2 + $0x78] sm:$0xff] %vm1549, %v1390
    %1566 = vst.msk [vmem:[#allocation2 + $0x80] sm:$0xff] %vm1549, %v1463
    %1567 = vst.msk [vmem:[#allocation2 + $0x88] sm:$0xff] %vm1549, %v1468
    %1568 = vst.msk [vmem:[#allocation2 + $0x90] sm:$0xff] %vm1549, %v1541
    %1569 = vst.msk [vmem:[#allocation2 + $0x98] sm:$0xff] %vm1549, %v1546
    // Predicated region
    $region14: #{all_body_forward.3} parent=1 // pred_check
      _
    $region15: #{all_body_forward.3} parent=1 // pred_check_branch
      %1571 = sbr.rel (0) target = $region17
    $region16: #{all_body_forward.3} parent=1 // pred_region
      %s1573 = ssub.s32 2560, 2560
      %1574 = vsyncadd [#allocation3], %s1573
      %s1575 = sshll.u32 [#allocation2], 4
      %s1576 = int_to_ptr.vmem [resolvable:$true] %s1575
      %1581 = dma.vmem_to_hbm [thread:$0]  %s1576, 2560, %s3, [#allocation3], 128, 128, 8
    $region17: #{all_body_forward.3} parent=1 // pred_fallthru
      _
    // Predicated region
    $region18: #{all_body_forward.3} parent=1 // pred_check
      _
    $region19: #{all_body_forward.3} parent=1 // pred_check_branch
      %1583 = sbr.rel (0) target = $region21
    $region20: #{all_body_forward.3} parent=1 // pred_region
      %1584 = dma.done [#allocation3], 2560
    $region21: #{all_body_forward.3} parent=1 // pred_fallthru
      _
    %1585 = vsyncpa [#allocation3], 1

</llo_original>
